<compile_context>
chip_gen: v6e
topology: v6e:2x2x1
jax: 0.10.0
libtpu: 0.0.40
codegen_flags: <defaults>
</compile_context>

<pallas_src>
import jax
import jax.numpy as jnp
from jax import lax
from jax.experimental import pallas as pl
from jax.experimental.pallas import tpu as pltpu

EPS = 1e-5  # nn.LayerNorm default


def _patch_merge_kernel(x_ref, w0_ref, w1_ref, b_ref, o_ref):
    """x_ref : (tr, 2, W2, 2C) raw input row-pairs; chunk order p0=[x0|x2], p1=[x1|x3]
       w0_ref: (2C, 2C) folded weight rows for p0 (gamma folded in, MXU dtype)
       w1_ref: (2C, 2C) folded weight rows for p1
       b_ref : (1, 2C)  folded bias (beta @ W), f32
       o_ref : (tr, W2, 2C)"""
    x = x_ref[...]                               # (tr, 2, W2, 2C)
    tr, _, w2, c2 = x.shape
    n = tr * w2
    inv_feat = 1.0 / (2 * c2)                    # 1 / (4C)

    p0 = x[:, 0].reshape(n, c2)                  # [x0 | x2] per output pixel
    p1 = x[:, 1].reshape(n, c2)                  # [x1 | x3]

    # LayerNorm over the virtual 4C row [p0 | p1] without concatenating.
    # f32 accumulation; two-pass variance (matches torch more closely and the
    # extra VPU work is free in this HBM-bound kernel).
    mean = (jnp.sum(p0, axis=-1, keepdims=True, dtype=jnp.float32)
            + jnp.sum(p1, axis=-1, keepdims=True, dtype=jnp.float32)) * inv_feat
    d0 = p0.astype(jnp.float32) - mean
    d1 = p1.astype(jnp.float32) - mean
    var = (jnp.sum(d0 * d0, axis=-1, keepdims=True)
           + jnp.sum(d1 * d1, axis=-1, keepdims=True)) * inv_feat
    inv = lax.rsqrt(var + EPS)

    # Affine folded into W/bias; MXU runs in the (bf16) weight dtype, f32 acc.
    mm_dtype = w0_ref.dtype
    out = jnp.dot((d0 * inv).astype(mm_dtype), w0_ref[...],
                  preferred_element_type=jnp.float32)
    out = out + jnp.dot((d1 * inv).astype(mm_dtype), w1_ref[...],
                        preferred_element_type=jnp.float32)
    out = out + b_ref[...]
    o_ref[...] = out.reshape(tr, w2, c2).astype(o_ref.dtype)


def _permute_chunks(a, c):
    """Module feature-chunk order [x0,x1,x2,x3] -> kernel order [x0,x2,x1,x3]
    along axis 0 (works for 1-D gamma/beta and 2-D (4C, 2C) weights)."""
    return jnp.concatenate(
        [a[0 * c:1 * c], a[2 * c:3 * c], a[1 * c:2 * c], a[3 * c:4 * c]], axis=0)


def _vmem_capacity_bytes():
    """Per-TensorCore VMEM capacity; conservative (v7x-sized) fallback."""
    try:
        cap = getattr(pltpu.get_tpu_info(), "vmem_capacity_bytes", None)
        if cap:
            return int(cap)
    except Exception:
        pass
    return 64 * 1024 * 1024


def _resident_spec(shape, single_buffer):
    """BlockSpec for a grid-invariant (resident) operand."""
    idx = lambda i: (0,) * len(shape)
    if single_buffer:
        try:
            return pl.BlockSpec(shape, idx, pipeline_mode=pl.Buffered(1))
        except TypeError:  # older jax without pipeline_mode kwarg
            pass
    return pl.BlockSpec(shape, idx)


def patch_merging(x, w_reduction, gamma, beta, *, target_rows=2048,
                  mm_dtype=jnp.bfloat16):
    """
    x:           (..., H, W, C)   channels-last
    w_reduction: (2C, 4C)         nn.Linear weight (out, in), no bias
    gamma, beta: (4C,)            LayerNorm affine params
    returns:     (..., ceil(H/2), ceil(W/2), 2C)
    """
    lead = x.shape[:-3]
    h, w, c = x.shape[-3:]
    x = x.reshape((-1, h, w, c))
    b = x.shape[0]

    # Spatial pad up to even only when needed (avoids an extra HBM pass).
    if (h % 2) or (w % 2):
        x = jnp.pad(x, ((0, 0), (0, h % 2), (0, w % 2), (0, 0)))
    hp, wp = x.shape[1], x.shape[2]
    h2, w2 = hp // 2, wp // 2
    c2 = 2 * c

    # Free row-major reshape: x_r[r, p, j, q*C + ch] == x[b, 2i+p, 2j+q, ch],
    # r = b*H2 + i.  So p=0 row chunks are [x0|x2], p=1 chunks are [x1|x3].
    x_r = x.reshape(b * h2, 2, w2, c2)

    # Permute affine/weight rows to the kernel's chunk order and fold the
    # LayerNorm affine into the linear:  out = xn @ (g*W) + (beta @ W).
    w_t = w_reduction.T.astype(jnp.float32)               # (4C, 2C)
    g_p = _permute_chunks(gamma.astype(jnp.float32), c)
    b_p = _permute_chunks(beta.astype(jnp.float32), c)
    w_p = _permute_chunks(w_t, c)                          # (4C, 2C), rows permuted
    w_fold = (g_p[:, None] * w_p).astype(mm_dtype)         # bf16 MXU operand
    bias = (b_p @ w_p)[None, :]                            # (1, 2C) f32
    w0, w1 = w_fold[:c2], w_fold[c2:]                      # halves for p0 / p1

    # --- VMEM-aware row-pair tiling (generation aware) -----------------------
    n_rows = b * h2
    x_bytes = jnp.dtype(x.dtype).itemsize
    mm_bytes = jnp.dtype(mm_dtype).itemsize

    vmem_cap = _vmem_capacity_bytes()
    vmem_limit = (vmem_cap // 8) * 7            # ~112 MiB v5e/v6e, ~56 MiB v7x

    # Resident (single-buffered) weights + bias.
    wgt_resident = 2 * (c2 * c2 * mm_bytes) + c2 * 4
    # Per row-pair footprint: double-buffered in/out blocks + in-kernel
    # intermediates (d0/d1 f32, xn halves in MXU dtype, f32 matmul accum).
    per_row = (
        2 * (2 * w2 * c2 * x_bytes)             # input block  (x2 buffers)
        + 2 * (w2 * c2 * x_bytes)               # output block (x2 buffers)
        + w2 * (2 * c2 * 4                      # d0, d1 (f32)
                + 2 * c2 * mm_bytes             # xn halves (bf16)
                + 2 * c2 * 4))                  # f32 matmul accum / temporaries
    budget = vmem_limit - wgt_resident - (4 << 20)   # compiler-scratch headroom
    cap_rows = budget // per_row if budget > 0 else 1
    tile_r = max(1, min(target_rows // max(w2, 1), cap_rows))
    tile_r = min(tile_r, n_rows)

    grid = (pl.cdiv(n_rows, tile_r),)

    def _run(single_buffer_weights):
        return pl.pallas_call(
            _patch_merge_kernel,
            out_shape=jax.ShapeDtypeStruct((n_rows, w2, c2), x.dtype),
            grid_spec=pltpu.PrefetchScalarGridSpec(
                num_scalar_prefetch=0,
                grid=grid,
                in_specs=[
                    # Raw input row-pairs (last two block dims = full array dims).
                    pl.BlockSpec((tile_r, 2, w2, c2), lambda i: (i, 0, 0, 0)),
                    # Resident folded-weight halves + bias (fetched once).
                    _resident_spec((c2, c2), single_buffer_weights),
                    _resident_spec((c2, c2), single_buffer_weights),
                    _resident_spec((1, c2), single_buffer_weights),
                ],
                # True 2C store width (full array dim): no dead columns, no
                # post-kernel un-pad slice / extra HBM pass.
                out_specs=pl.BlockSpec((tile_r, w2, c2), lambda i: (i, 0, 0)),
            ),
            compiler_params=pltpu.CompilerParams(
                dimension_semantics=("parallel",),
                vmem_limit_bytes=int(vmem_limit)),
        )(x_r, w0, w1, bias)

    try:
        out = _run(True)
    except Exception:
        # Fallback for environments where Buffered(1) single-buffering is not
        # supported by the pallas_call pipeline; identical semantics.
        out = _run(False)

    return out.reshape(lead + (h2, w2, c2))


def _reference(x, w_reduction, gamma, beta):
    """Pure-JAX f32 reference matching the PyTorch PatchMerging forward."""
    b, h, w, c = x.shape
    x = jnp.pad(x, ((0, 0), (0, h % 2), (0, w % 2), (0, 0)))
    x0 = x[:, 0::2, 0::2, :]
    x1 = x[:, 1::2, 0::2, :]
    x2 = x[:, 0::2, 1::2, :]
    x3 = x[:, 1::2, 1::2, :]
    xc = jnp.concatenate([x0, x1, x2, x3], axis=-1).astype(jnp.float32)
    mean = jnp.mean(xc, axis=-1, keepdims=True)
    var = jnp.mean((xc - mean) ** 2, axis=-1, keepdims=True)
    y = (xc - mean) * lax.rsqrt(var + EPS) * gamma + beta
    return jnp.einsum("...i,oi->...o", y, w_reduction.astype(jnp.float32))


if __name__ == "__main__":
    key = jax.random.PRNGKey(0)
    k_x, k_w, k_g, k_b, k_x2 = jax.random.split(key, 5)

    # Primary case: even H/W, lane-aligned channels (4C=256 in, 2C=128 out).
    B, H, W, C = 2, 16, 16, 64
    x = jax.random.normal(k_x, (B, H, W, C), dtype=jnp.float32)
    w_reduction = jax.random.normal(k_w, (2 * C, 4 * C), dtype=jnp.float32) * 0.05
    gamma = 1.0 + 0.1 * jax.random.normal(k_g, (4 * C,), dtype=jnp.float32)
    beta = 0.1 * jax.random.normal(k_b, (4 * C,), dtype=jnp.float32)

    out = jax.block_until_ready(patch_merging(x, w_reduction, gamma, beta))
    ref = _reference(x, w_reduction, gamma, beta)
    assert out.shape == (B, H // 2, W // 2, 2 * C), out.shape
    # bf16 MXU operands (f32 accumulation) -> compare with a bf16-scale tolerance.
    err = float(jnp.max(jnp.abs(out - ref)))
    assert err < 2e-2, err

    # Second case: odd H (spatial pad) + multi-step grid with a ragged final
    # row tile (grid = cdiv; boundary block clipped by Pallas; ops are
    # row-wise so garbage rows in the clipped block never reach HBM).
    B2, H2, W2 = 3, 13, 16
    x2 = jax.random.normal(k_x2, (B2, H2, W2, C), dtype=jnp.float32)
    out2 = jax.block_until_ready(
        patch_merging(x2, w_reduction, gamma, beta, target_rows=64))
    ref2 = _reference(x2, w_reduction, gamma, beta)
    assert out2.shape == (B2, (H2 + 1) // 2, W2 // 2, 2 * C), out2.shape
    err2 = float(jnp.max(jnp.abs(out2 - ref2)))
    assert err2 < 2e-2, err2

    print("KERNEL_OK")
</pallas_src>

<mosaic_0001>
module attributes {stable_mosaic.version = 11 : i64} {
  func.func @_patch_merge_kernel(%arg0: i32, %arg1: memref<16x2x8x128xf32, #tpu.memory_space<vmem>>, %arg2: memref<128x128xbf16, #tpu.memory_space<vmem>>, %arg3: memref<128x128xbf16, #tpu.memory_space<vmem>>, %arg4: memref<1x128xf32, #tpu.memory_space<vmem>>, %arg5: memref<16x8x128xf32, #tpu.memory_space<vmem>>) attributes {dimension_semantics = [#tpu.dimension_semantics<parallel>], iteration_bounds = array<i64: 1>, scalar_prefetch = 0 : i64, scratch_operands = 0 : i64, tpu.core_type = #tpu.core_type<tc>, window_params = [{transform_indices = @transform_0, window_bounds = array<i64: 16, 2, 8, 128>}, {pipeline_mode = #tpu.pipeline_mode<synchronous>, transform_indices = @transform_1, window_bounds = array<i64: 128, 128>}, {pipeline_mode = #tpu.pipeline_mode<synchronous>, transform_indices = @transform_2, window_bounds = array<i64: 128, 128>}, {pipeline_mode = #tpu.pipeline_mode<synchronous>, transform_indices = @transform_3, window_bounds = array<i64: 1, 128>}, {transform_indices = @transform_4, window_bounds = array<i64: 16, 8, 128>}]} {
    %c0 = arith.constant 0 : index
    %c0_0 = arith.constant 0 : index
    %c0_1 = arith.constant 0 : index
    %c0_2 = arith.constant 0 : index
    %0 = vector.load %arg1[%c0, %c0_0, %c0_1, %c0_2] : memref<16x2x8x128xf32, #tpu.memory_space<vmem>>, vector<16x2x8x128xf32>
    %1 = vector.extract_strided_slice %0 {offsets = [0, 0, 0, 0], sizes = [16, 1, 8, 128], strides = [1, 1, 1, 1]} : vector<16x2x8x128xf32> to vector<16x1x8x128xf32>
    %2 = vector.shape_cast %1 : vector<16x1x8x128xf32> to vector<16x8x128xf32>
    %3 = vector.shape_cast %2 : vector<16x8x128xf32> to vector<128x128xf32>
    %4 = vector.extract_strided_slice %0 {offsets = [0, 1, 0, 0], sizes = [16, 1, 8, 128], strides = [1, 1, 1, 1]} : vector<16x2x8x128xf32> to vector<16x1x8x128xf32>
    %5 = vector.shape_cast %4 : vector<16x1x8x128xf32> to vector<16x8x128xf32>
    %6 = vector.shape_cast %5 : vector<16x8x128xf32> to vector<128x128xf32>
    %cst = arith.constant dense<0.000000e+00> : vector<128xf32>
    %7 = vector.multi_reduction <add>, %3, %cst [1] : vector<128x128xf32> to vector<128xf32>
    %8 = vector.shape_cast %7 : vector<128xf32> to vector<128x1xf32>
    %cst_3 = arith.constant dense<0.000000e+00> : vector<128xf32>
    %9 = vector.multi_reduction <add>, %6, %cst_3 [1] : vector<128x128xf32> to vector<128xf32>
    %10 = vector.shape_cast %9 : vector<128xf32> to vector<128x1xf32>
    %11 = arith.addf %8, %10 : vector<128x1xf32>
    %cst_4 = arith.constant 3.906250e-03 : f32
    %12 = vector.broadcast %cst_4 : f32 to vector<128x1xf32>
    %13 = arith.mulf %11, %12 : vector<128x1xf32>
    %14 = vector.broadcast %13 : vector<128x1xf32> to vector<128x128xf32>
    %15 = arith.subf %3, %14 : vector<128x128xf32>
    %16 = vector.broadcast %13 : vector<128x1xf32> to vector<128x128xf32>
    %17 = arith.subf %6, %16 : vector<128x128xf32>
    %18 = arith.mulf %15, %15 : vector<128x128xf32>
    %cst_5 = arith.constant dense<0.000000e+00> : vector<128xf32>
    %19 = vector.multi_reduction <add>, %18, %cst_5 [1] : vector<128x128xf32> to vector<128xf32>
    %20 = vector.shape_cast %19 : vector<128xf32> to vector<128x1xf32>
    %21 = arith.mulf %17, %17 : vector<128x128xf32>
    %cst_6 = arith.constant dense<0.000000e+00> : vector<128xf32>
    %22 = vector.multi_reduction <add>, %21, %cst_6 [1] : vector<128x128xf32> to vector<128xf32>
    %23 = vector.shape_cast %22 : vector<128xf32> to vector<128x1xf32>
    %24 = arith.addf %20, %23 : vector<128x1xf32>
    %cst_7 = arith.constant 3.906250e-03 : f32
    %25 = vector.broadcast %cst_7 : f32 to vector<128x1xf32>
    %26 = arith.mulf %24, %25 : vector<128x1xf32>
    %cst_8 = arith.constant 9.99999974E-6 : f32
    %27 = vector.broadcast %cst_8 : f32 to vector<128x1xf32>
    %28 = arith.addf %26, %27 : vector<128x1xf32>
    %29 = math.rsqrt %28 : vector<128x1xf32>
    %30 = vector.broadcast %29 : vector<128x1xf32> to vector<128x128xf32>
    %31 = arith.mulf %15, %30 : vector<128x128xf32>
    %32 = arith.truncf %31 : vector<128x128xf32> to vector<128x128xbf16>
    %c0_9 = arith.constant 0 : index
    %c0_10 = arith.constant 0 : index
    %33 = vector.load %arg2[%c0_9, %c0_10] : memref<128x128xbf16, #tpu.memory_space<vmem>>, vector<128x128xbf16>
    %cst_11 = arith.constant dense<0.000000e+00> : vector<128x128xf32>
    %34 = tpu.matmul %32, %33, %cst_11 {dimension_numbers = #tpu.dot_dimension_numbers<[1], [0], [0], [1], [0, 0, 1, 1], [], []>} : vector<128x128xbf16>, vector<128x128xbf16>, vector<128x128xf32> -> vector<128x128xf32>
    %35 = vector.broadcast %29 : vector<128x1xf32> to vector<128x128xf32>
    %36 = arith.mulf %17, %35 : vector<128x128xf32>
    %37 = arith.truncf %36 : vector<128x128xf32> to vector<128x128xbf16>
    %c0_12 = arith.constant 0 : index
    %c0_13 = arith.constant 0 : index
    %38 = vector.load %arg3[%c0_12, %c0_13] : memref<128x128xbf16, #tpu.memory_space<vmem>>, vector<128x128xbf16>
    %cst_14 = arith.constant dense<0.000000e+00> : vector<128x128xf32>
    %39 = tpu.matmul %37, %38, %cst_14 {dimension_numbers = #tpu.dot_dimension_numbers<[1], [0], [0], [1], [0, 0, 1, 1], [], []>} : vector<128x128xbf16>, vector<128x128xbf16>, vector<128x128xf32> -> vector<128x128xf32>
    %40 = arith.addf %34, %39 : vector<128x128xf32>
    %c0_15 = arith.constant 0 : index
    %c0_16 = arith.constant 0 : index
    %41 = vector.load %arg4[%c0_15, %c0_16] : memref<1x128xf32, #tpu.memory_space<vmem>>, vector<1x128xf32>
    %42 = vector.broadcast %41 : vector<1x128xf32> to vector<128x128xf32>
    %43 = arith.addf %40, %42 : vector<128x128xf32>
    %44 = vector.shape_cast %43 : vector<128x128xf32> to vector<16x8x128xf32>
    %c0_17 = arith.constant 0 : index
    %c0_18 = arith.constant 0 : index
    %c0_19 = arith.constant 0 : index
    %45 = vector.load %arg5[%c0_17, %c0_18, %c0_19] : memref<16x8x128xf32, #tpu.memory_space<vmem>>, vector<16x8x128xf32>
    tpu.vector_store %arg5[%c0_17, %c0_18, %c0_19], %44 {strides = array<i32>} : memref<16x8x128xf32, #tpu.memory_space<vmem>>, vector<16x8x128xf32>,
    return
  }
  func.func @transform_0(%arg0: i32) -> (i32, i32, i32, i32) {
    %c0_i32 = arith.constant 0 : i32
    %c0_i32_0 = arith.constant 0 : i32
    %c0_i32_1 = arith.constant 0 : i32
    %c0_i32_2 = arith.constant 0 : i32
    return %arg0, %c0_i32, %c0_i32_0, %c0_i32_1 : i32, i32, i32, i32
  }
  func.func @transform_1(%arg0: i32) -> (i32, i32) {
    %c0_i32 = arith.constant 0 : i32
    %c0_i32_0 = arith.constant 0 : i32
    %c0_i32_1 = arith.constant 0 : i32
    return %c0_i32, %c0_i32_0 : i32, i32
  }
  func.func @transform_2(%arg0: i32) -> (i32, i32) {
    %c0_i32 = arith.constant 0 : i32
    %c0_i32_0 = arith.constant 0 : i32
    %c0_i32_1 = arith.constant 0 : i32
    return %c0_i32, %c0_i32_0 : i32, i32
  }
  func.func @transform_3(%arg0: i32) -> (i32, i32) {
    %c0_i32 = arith.constant 0 : i32
    %c0_i32_0 = arith.constant 0 : i32
    %c0_i32_1 = arith.constant 0 : i32
    return %c0_i32, %c0_i32_0 : i32, i32
  }
  func.func @transform_4(%arg0: i32) -> (i32, i32, i32) {
    %c0_i32 = arith.constant 0 : i32
    %c0_i32_0 = arith.constant 0 : i32
    %c0_i32_1 = arith.constant 0 : i32
    return %arg0, %c0_i32, %c0_i32_0 : i32, i32, i32
  }
}

module attributes {stable_mosaic.version = 11 : i64} {
  func.func @_patch_merge_kernel(%arg0: i32, %arg1: memref<16x2x8x128xf32, #tpu.memory_space<vmem>>, %arg2: memref<128x128xbf16, #tpu.memory_space<vmem>>, %arg3: memref<128x128xbf16, #tpu.memory_space<vmem>>, %arg4: memref<1x128xf32, #tpu.memory_space<vmem>>, %arg5: memref<16x8x128xf32, #tpu.memory_space<vmem>>) attributes {dimension_semantics = [#tpu.dimension_semantics<parallel>], iteration_bounds = array<i64: 1>, scalar_prefetch = 0 : i64, scratch_operands = 0 : i64, tpu.core_type = #tpu.core_type<tc>, window_params = [{transform_indices = @transform_0, window_bounds = array<i64: 16, 2, 8, 128>}, {pipeline_mode = #tpu.pipeline_mode<synchronous>, transform_indices = @transform_1, window_bounds = array<i64: 128, 128>}, {pipeline_mode = #tpu.pipeline_mode<synchronous>, transform_indices = @transform_2, window_bounds = array<i64: 128, 128>}, {pipeline_mode = #tpu.pipeline_mode<synchronous>, transform_indices = @transform_3, window_bounds = array<i64: 1, 128>}, {transform_indices = @transform_4, window_bounds = array<i64: 16, 8, 128>}]} {
    %c0 = arith.constant 0 : index
    %c0_0 = arith.constant 0 : index
    %c0_1 = arith.constant 0 : index
    %c0_2 = arith.constant 0 : index
    %0 = vector.load %arg1[%c0, %c0_0, %c0_1, %c0_2] : memref<16x2x8x128xf32, #tpu.memory_space<vmem>>, vector<16x2x8x128xf32>
    %1 = vector.extract_strided_slice %0 {offsets = [0, 0, 0, 0], sizes = [16, 1, 8, 128], strides = [1, 1, 1, 1]} : vector<16x2x8x128xf32> to vector<16x1x8x128xf32>
    %2 = vector.shape_cast %1 : vector<16x1x8x128xf32> to vector<16x8x128xf32>
    %3 = vector.shape_cast %2 : vector<16x8x128xf32> to vector<128x128xf32>
    %4 = vector.extract_strided_slice %0 {offsets = [0, 1, 0, 0], sizes = [16, 1, 8, 128], strides = [1, 1, 1, 1]} : vector<16x2x8x128xf32> to vector<16x1x8x128xf32>
    %5 = vector.shape_cast %4 : vector<16x1x8x128xf32> to vector<16x8x128xf32>
    %6 = vector.shape_cast %5 : vector<16x8x128xf32> to vector<128x128xf32>
    %cst = arith.constant dense<0.000000e+00> : vector<128xf32>
    %7 = vector.multi_reduction <add>, %3, %cst [1] : vector<128x128xf32> to vector<128xf32>
    %8 = vector.shape_cast %7 : vector<128xf32> to vector<128x1xf32>
    %cst_3 = arith.constant dense<0.000000e+00> : vector<128xf32>
    %9 = vector.multi_reduction <add>, %6, %cst_3 [1] : vector<128x128xf32> to vector<128xf32>
    %10 = vector.shape_cast %9 : vector<128xf32> to vector<128x1xf32>
    %11 = arith.addf %8, %10 : vector<128x1xf32>
    %cst_4 = arith.constant 3.906250e-03 : f32
    %12 = vector.broadcast %cst_4 : f32 to vector<128x1xf32>
    %13 = arith.mulf %11, %12 : vector<128x1xf32>
    %14 = vector.broadcast %13 : vector<128x1xf32> to vector<128x128xf32>
    %15 = arith.subf %3, %14 : vector<128x128xf32>
    %16 = vector.broadcast %13 : vector<128x1xf32> to vector<128x128xf32>
    %17 = arith.subf %6, %16 : vector<128x128xf32>
    %18 = arith.mulf %15, %15 : vector<128x128xf32>
    %cst_5 = arith.constant dense<0.000000e+00> : vector<128xf32>
    %19 = vector.multi_reduction <add>, %18, %cst_5 [1] : vector<128x128xf32> to vector<128xf32>
    %20 = vector.shape_cast %19 : vector<128xf32> to vector<128x1xf32>
    %21 = arith.mulf %17, %17 : vector<128x128xf32>
    %cst_6 = arith.constant dense<0.000000e+00> : vector<128xf32>
    %22 = vector.multi_reduction <add>, %21, %cst_6 [1] : vector<128x128xf32> to vector<128xf32>
    %23 = vector.shape_cast %22 : vector<128xf32> to vector<128x1xf32>
    %24 = arith.addf %20, %23 : vector<128x1xf32>
    %cst_7 = arith.constant 3.906250e-03 : f32
    %25 = vector.broadcast %cst_7 : f32 to vector<128x1xf32>
    %26 = arith.mulf %24, %25 : vector<128x1xf32>
    %cst_8 = arith.constant 9.99999974E-6 : f32
    %27 = vector.broadcast %cst_8 : f32 to vector<128x1xf32>
    %28 = arith.addf %26, %27 : vector<128x1xf32>
    %29 = math.rsqrt %28 : vector<128x1xf32>
    %30 = vector.broadcast %29 : vector<128x1xf32> to vector<128x128xf32>
    %31 = arith.mulf %15, %30 : vector<128x128xf32>
    %32 = arith.truncf %31 : vector<128x128xf32> to vector<128x128xbf16>
    %c0_9 = arith.constant 0 : index
    %c0_10 = arith.constant 0 : index
    %33 = vector.load %arg2[%c0_9, %c0_10] : memref<128x128xbf16, #tpu.memory_space<vmem>>, vector<128x128xbf16>
    %cst_11 = arith.constant dense<0.000000e+00> : vector<128x128xf32>
    %34 = tpu.matmul %32, %33, %cst_11 {dimension_numbers = #tpu.dot_dimension_numbers<[1], [0], [0], [1], [0, 0, 1, 1], [], []>} : vector<128x128xbf16>, vector<128x128xbf16>, vector<128x128xf32> -> vector<128x128xf32>
    %35 = vector.broadcast %29 : vector<128x1xf32> to vector<128x128xf32>
    %36 = arith.mulf %17, %35 : vector<128x128xf32>
    %37 = arith.truncf %36 : vector<128x128xf32> to vector<128x128xbf16>
    %c0_12 = arith.constant 0 : index
    %c0_13 = arith.constant 0 : index
    %38 = vector.load %arg3[%c0_12, %c0_13] : memref<128x128xbf16, #tpu.memory_space<vmem>>, vector<128x128xbf16>
    %cst_14 = arith.constant dense<0.000000e+00> : vector<128x128xf32>
    %39 = tpu.matmul %37, %38, %cst_14 {dimension_numbers = #tpu.dot_dimension_numbers<[1], [0], [0], [1], [0, 0, 1, 1], [], []>} : vector<128x128xbf16>, vector<128x128xbf16>, vector<128x128xf32> -> vector<128x128xf32>
    %40 = arith.addf %34, %39 : vector<128x128xf32>
    %c0_15 = arith.constant 0 : index
    %c0_16 = arith.constant 0 : index
    %41 = vector.load %arg4[%c0_15, %c0_16] : memref<1x128xf32, #tpu.memory_space<vmem>>, vector<1x128xf32>
    %42 = vector.broadcast %41 : vector<1x128xf32> to vector<128x128xf32>
    %43 = arith.addf %40, %42 : vector<128x128xf32>
    %44 = vector.shape_cast %43 : vector<128x128xf32> to vector<16x8x128xf32>
    %c0_17 = arith.constant 0 : index
    %c0_18 = arith.constant 0 : index
    %c0_19 = arith.constant 0 : index
    %45 = vector.load %arg5[%c0_17, %c0_18, %c0_19] : memref<16x8x128xf32, #tpu.memory_space<vmem>>, vector<16x8x128xf32>
    tpu.vector_store %arg5[%c0_17, %c0_18, %c0_19], %44 {strides = array<i32>} : memref<16x8x128xf32, #tpu.memory_space<vmem>>, vector<16x8x128xf32>,
    return
  }
  func.func @transform_0(%arg0: i32) -> (i32, i32, i32, i32) {
    %c0_i32 = arith.constant 0 : i32
    %c0_i32_0 = arith.constant 0 : i32
    %c0_i32_1 = arith.constant 0 : i32
    %c0_i32_2 = arith.constant 0 : i32
    return %arg0, %c0_i32, %c0_i32_0, %c0_i32_1 : i32, i32, i32, i32
  }
  func.func @transform_1(%arg0: i32) -> (i32, i32) {
    %c0_i32 = arith.constant 0 : i32
    %c0_i32_0 = arith.constant 0 : i32
    %c0_i32_1 = arith.constant 0 : i32
    return %c0_i32, %c0_i32_0 : i32, i32
  }
  func.func @transform_2(%arg0: i32) -> (i32, i32) {
    %c0_i32 = arith.constant 0 : i32
    %c0_i32_0 = arith.constant 0 : i32
    %c0_i32_1 = arith.constant 0 : i32
    return %c0_i32, %c0_i32_0 : i32, i32
  }
  func.func @transform_3(%arg0: i32) -> (i32, i32) {
    %c0_i32 = arith.constant 0 : i32
    %c0_i32_0 = arith.constant 0 : i32
    %c0_i32_1 = arith.constant 0 : i32
    return %c0_i32, %c0_i32_0 : i32, i32
  }
  func.func @transform_4(%arg0: i32) -> (i32, i32, i32) {
    %c0_i32 = arith.constant 0 : i32
    %c0_i32_0 = arith.constant 0 : i32
    %c0_i32_1 = arith.constant 0 : i32
    return %arg0, %c0_i32, %c0_i32_0 : i32, i32, i32
  }
}

</mosaic_0001>

<llo_original>
// kernel: tpu_custom_call.1
$region0: #{tpu_custom_call.1}
  #allocation0 [shape = 'u32[]', space=smem, size = 0x4, offset = 0x4, fixed_abs, tag = 'smem constant byte address 0x4 - core index']
  #allocation1 [shape = 'u32[144,128]{1,0:T(1,128)}', space=vmem, size = 0x12000, scoped, tag = 'internal scratch']
  %s0 = inlined_call_operand.hbm [shape: f32[16,2,8,128], index: 0, kind: input, shape index: {}]
  %s1 = inlined_call_operand.hbm [shape: bf16[128,128], index: 1, kind: input, shape index: {}]
  %s2 = inlined_call_operand.hbm [shape: bf16[128,128], index: 2, kind: input, shape index: {}]
  %s3 = inlined_call_operand.vmem [shape: f32[1,128], index: 3, kind: input, shape index: {}]
  %s4 = inlined_call_operand.hbm [shape: f32[16,8,128], index: 4, kind: output, shape index: {}]
  %s5 = sld [smem:[#allocation0]]
  $region38: #{tpu_custom_call.1} parent=0
    _
  %s7 = ssub.s32 1, %s5
  %s8 = scalar_select 0, %s7, %s5
  $region1: #{tpu_custom_call.1} parent=0
    #allocation2 [shape = 'u8[131072]{0}', space=vmem, size = 0x20000, scoped, tag = 'input window, operand 0, single buffered']
    #allocation3 [shape = 's32[1]{0}', space=sflag, size = 0x4, scoped, tag = 'scoped memory for tpu_custom_call.1']
    #allocation4 [shape = 's32[1]{0}', space=sflag, size = 0x4, scoped, tag = 'scoped memory for tpu_custom_call.1']
    #allocation5 [shape = 'u8[32768]{0}', space=vmem, size = 0x8000, scoped, tag = 'input window, operand 1, single buffered']
    #allocation6 [shape = 's32[1]{0}', space=sflag, size = 0x4, scoped, tag = 'scoped memory for tpu_custom_call.1']
    #allocation7 [shape = 'u8[32768]{0}', space=vmem, size = 0x8000, scoped, tag = 'input window, operand 2, single buffered']
    #allocation8 [shape = 'u8[65536]{0}', space=vmem, size = 0x10000, scoped, tag = 'output window, operand 0, single buffered']
    %9 = vsyncpa [#allocation3], 0
    %10 = vsyncpa [#allocation6], 0
    %11 = vsyncpa [#allocation4], 0
    // Predicated region
    $region2: #{tpu_custom_call.1} parent=1 // pred_check
      _
    $region3: #{tpu_custom_call.1} parent=1 // pred_check_branch
      %13 = sbr.rel (0) target = $region5
    $region4: #{tpu_custom_call.1} parent=1 // pred_region
      %s15 = ssub.s32 4096, 4096
      %16 = vsyncadd [#allocation3], %s15
      %s17 = sshll.u32 [#allocation2], 4
      %s18 = int_to_ptr.vmem [resolvable:$true] %s17
      %23 = dma.hbm_to_vmem [thread:$0]  %s0, 4096, %s18, [#allocation3], 128, 128, 8
    $region5: #{tpu_custom_call.1} parent=1 // pred_fallthru
      _
    // Predicated region
    $region6: #{tpu_custom_call.1} parent=1 // pred_check
      _
    $region7: #{tpu_custom_call.1} parent=1 // pred_check_branch
      %25 = sbr.rel (0) target = $region9
    $region8: #{tpu_custom_call.1} parent=1 // pred_region
      %s27 = ssub.s32 1024, 1024
      %28 = vsyncadd [#allocation6], %s27
      %s29 = sshll.u32 [#allocation5], 4
      %s30 = int_to_ptr.vmem [resolvable:$true] %s29
      %35 = dma.hbm_to_vmem [thread:$0]  %s1, 1024, %s30, [#allocation6], 64, 64, 4
    $region9: #{tpu_custom_call.1} parent=1 // pred_fallthru
      _
    // Predicated region
    $region10: #{tpu_custom_call.1} parent=1 // pred_check
      _
    $region11: #{tpu_custom_call.1} parent=1 // pred_check_branch
      %37 = sbr.rel (0) target = $region13
    $region12: #{tpu_custom_call.1} parent=1 // pred_region
      %s39 = ssub.s32 1024, 1024
      %40 = vsyncadd [#allocation6], %s39
      %s41 = sshll.u32 [#allocation7], 4
      %s42 = int_to_ptr.vmem [resolvable:$true] %s41
      %47 = dma.hbm_to_vmem [thread:$0]  %s2, 1024, %s42, [#allocation6], 64, 64, 4
    $region13: #{tpu_custom_call.1} parent=1 // pred_fallthru
      _
    // Predicated region
    $region14: #{tpu_custom_call.1} parent=1 // pred_check
      _
    $region15: #{tpu_custom_call.1} parent=1 // pred_check_branch
      %49 = sbr.rel (0) target = $region17
    $region16: #{tpu_custom_call.1} parent=1 // pred_region
      _
    $region17: #{tpu_custom_call.1} parent=1 // pred_fallthru
      _
    // Predicated region
    $region18: #{tpu_custom_call.1} parent=1 // pred_check
      _
    $region19: #{tpu_custom_call.1} parent=1 // pred_check_branch
      %51 = sbr.rel (0) target = $region21
    $region20: #{tpu_custom_call.1} parent=1 // pred_region
      %52 = dma.done [#allocation3], 4096
    $region21: #{tpu_custom_call.1} parent=1 // pred_fallthru
      _
    // Predicated region
    $region22: #{tpu_custom_call.1} parent=1 // pred_check
      _
    $region23: #{tpu_custom_call.1} parent=1 // pred_check_branch
      %54 = sbr.rel (0) target = $region25
    $region24: #{tpu_custom_call.1} parent=1 // pred_region
      %55 = dma.done [#allocation6], 1024
    $region25: #{tpu_custom_call.1} parent=1 // pred_fallthru
      _
    // Predicated region
    $region26: #{tpu_custom_call.1} parent=1 // pred_check
      _
    $region27: #{tpu_custom_call.1} parent=1 // pred_check_branch
      %57 = sbr.rel (0) target = $region29
    $region28: #{tpu_custom_call.1} parent=1 // pred_region
      %58 = dma.done [#allocation6], 1024
    $region29: #{tpu_custom_call.1} parent=1 // pred_fallthru
      _
    %v60 = vld [vmem:[#allocation2] sm:$0xff]
    %v61 = vld [vmem:[#allocation2 + $0x8] sm:$0xff]
    %v62 = vld [vmem:[#allocation2 + $0x10] sm:$0xff]
    %v63 = vld [vmem:[#allocation2 + $0x18] sm:$0xff]
    %v64 = vld [vmem:[#allocation2 + $0x20] sm:$0xff]
    %v65 = vld [vmem:[#allocation2 + $0x28] sm:$0xff]
    %v66 = vld [vmem:[#allocation2 + $0x30] sm:$0xff]
    %v67 = vld [vmem:[#allocation2 + $0x38] sm:$0xff]
    %v68 = vld [vmem:[#allocation2 + $0x40] sm:$0xff]
    %v69 = vld [vmem:[#allocation2 + $0x48] sm:$0xff]
    %v70 = vld [vmem:[#allocation2 + $0x50] sm:$0xff]
    %v71 = vld [vmem:[#allocation2 + $0x58] sm:$0xff]
    %v72 = vld [vmem:[#allocation2 + $0x60] sm:$0xff]
    %v73 = vld [vmem:[#allocation2 + $0x68] sm:$0xff]
    %v74 = vld [vmem:[#allocation2 + $0x70] sm:$0xff]
    %v75 = vld [vmem:[#allocation2 + $0x78] sm:$0xff]
    %v76 = vld [vmem:[#allocation2 + $0x80] sm:$0xff]
    %v77 = vld [vmem:[#allocation2 + $0x88] sm:$0xff]
    %v78 = vld [vmem:[#allocation2 + $0x90] sm:$0xff]
    %v79 = vld [vmem:[#allocation2 + $0x98] sm:$0xff]
    %v80 = vld [vmem:[#allocation2 + $0xa0] sm:$0xff]
    %v81 = vld [vmem:[#allocation2 + $0xa8] sm:$0xff]
    %v82 = vld [vmem:[#allocation2 + $0xb0] sm:$0xff]
    %v83 = vld [vmem:[#allocation2 + $0xb8] sm:$0xff]
    %v84 = vld [vmem:[#allocation2 + $0xc0] sm:$0xff]
    %v85 = vld [vmem:[#allocation2 + $0xc8] sm:$0xff]
    %v86 = vld [vmem:[#allocation2 + $0xd0] sm:$0xff]
    %v87 = vld [vmem:[#allocation2 + $0xd8] sm:$0xff]
    %v88 = vld [vmem:[#allocation2 + $0xe0] sm:$0xff]
    %v89 = vld [vmem:[#allocation2 + $0xe8] sm:$0xff]
    %v90 = vld [vmem:[#allocation2 + $0xf0] sm:$0xff]
    %v91 = vld [vmem:[#allocation2 + $0xf8] sm:$0xff]
    %92 = vadd.xlane.f32.xlu0 %v60
    %v93 = vpop.xlane.xlu0 %92
    %94 = vadd.xlane.f32.xlu0 %v62
    %v95 = vpop.xlane.xlu0 %94
    %96 = vadd.xlane.f32.xlu0 %v64
    %v97 = vpop.xlane.xlu0 %96
    %98 = vadd.xlane.f32.xlu0 %v66
    %v99 = vpop.xlane.xlu0 %98
    %100 = vadd.xlane.f32.xlu0 %v68
    %v101 = vpop.xlane.xlu0 %100
    %102 = vadd.xlane.f32.xlu0 %v70
    %v103 = vpop.xlane.xlu0 %102
    %104 = vadd.xlane.f32.xlu0 %v72
    %v105 = vpop.xlane.xlu0 %104
    %106 = vadd.xlane.f32.xlu0 %v74
    %v107 = vpop.xlane.xlu0 %106
    %108 = vadd.xlane.f32.xlu0 %v76
    %v109 = vpop.xlane.xlu0 %108
    %110 = vadd.xlane.f32.xlu0 %v78
    %v111 = vpop.xlane.xlu0 %110
    %112 = vadd.xlane.f32.xlu0 %v80
    %v113 = vpop.xlane.xlu0 %112
    %114 = vadd.xlane.f32.xlu0 %v82
    %v115 = vpop.xlane.xlu0 %114
    %116 = vadd.xlane.f32.xlu0 %v84
    %v117 = vpop.xlane.xlu0 %116
    %118 = vadd.xlane.f32.xlu0 %v86
    %v119 = vpop.xlane.xlu0 %118
    %120 = vadd.xlane.f32.xlu0 %v88
    %v121 = vpop.xlane.xlu0 %120
    %122 = vadd.xlane.f32.xlu0 %v90
    %v123 = vpop.xlane.xlu0 %122
    %124 = vadd.xlane.f32.xlu0 %v61
    %v125 = vpop.xlane.xlu0 %124
    %126 = vadd.xlane.f32.xlu0 %v63
    %v127 = vpop.xlane.xlu0 %126
    %128 = vadd.xlane.f32.xlu0 %v65
    %v129 = vpop.xlane.xlu0 %128
    %130 = vadd.xlane.f32.xlu0 %v67
    %v131 = vpop.xlane.xlu0 %130
    %132 = vadd.xlane.f32.xlu0 %v69
    %v133 = vpop.xlane.xlu0 %132
    %134 = vadd.xlane.f32.xlu0 %v71
    %v135 = vpop.xlane.xlu0 %134
    %136 = vadd.xlane.f32.xlu0 %v73
    %v137 = vpop.xlane.xlu0 %136
    %138 = vadd.xlane.f32.xlu0 %v75
    %v139 = vpop.xlane.xlu0 %138
    %140 = vadd.xlane.f32.xlu0 %v77
    %v141 = vpop.xlane.xlu0 %140
    %142 = vadd.xlane.f32.xlu0 %v79
    %v143 = vpop.xlane.xlu0 %142
    %144 = vadd.xlane.f32.xlu0 %v81
    %v145 = vpop.xlane.xlu0 %144
    %146 = vadd.xlane.f32.xlu0 %v83
    %v147 = vpop.xlane.xlu0 %146
    %148 = vadd.xlane.f32.xlu0 %v85
    %v149 = vpop.xlane.xlu0 %148
    %150 = vadd.xlane.f32.xlu0 %v87
    %v151 = vpop.xlane.xlu0 %150
    %152 = vadd.xlane.f32.xlu0 %v89
    %v153 = vpop.xlane.xlu0 %152
    %154 = vadd.xlane.f32.xlu0 %v91
    %v155 = vpop.xlane.xlu0 %154
    %v156 = vadd.f32 %v93, %v125
    %v157 = vadd.f32 %v95, %v127
    %v158 = vadd.f32 %v97, %v129
    %v159 = vadd.f32 %v99, %v131
    %v160 = vadd.f32 %v101, %v133
    %v161 = vadd.f32 %v103, %v135
    %v162 = vadd.f32 %v105, %v137
    %v163 = vadd.f32 %v107, %v139
    %v164 = vadd.f32 %v109, %v141
    %v165 = vadd.f32 %v111, %v143
    %v166 = vadd.f32 %v113, %v145
    %v167 = vadd.f32 %v115, %v147
    %v168 = vadd.f32 %v117, %v149
    %v169 = vadd.f32 %v119, %v151
    %v170 = vadd.f32 %v121, %v153
    %v171 = vadd.f32 %v123, %v155
    %v172 = vmul.f32 %v156, 0.00390625
    %v173 = vmul.f32 %v157, 0.00390625
    %v174 = vmul.f32 %v158, 0.00390625
    %v175 = vmul.f32 %v159, 0.00390625
    %v176 = vmul.f32 %v160, 0.00390625
    %v177 = vmul.f32 %v161, 0.00390625
    %v178 = vmul.f32 %v162, 0.00390625
    %v179 = vmul.f32 %v163, 0.00390625
    %v180 = vmul.f32 %v164, 0.00390625
    %v181 = vmul.f32 %v165, 0.00390625
    %v182 = vmul.f32 %v166, 0.00390625
    %v183 = vmul.f32 %v167, 0.00390625
    %v184 = vmul.f32 %v168, 0.00390625
    %v185 = vmul.f32 %v169, 0.00390625
    %v186 = vmul.f32 %v170, 0.00390625
    %v187 = vmul.f32 %v171, 0.00390625
    %v188 = vsub.f32 %v60, %v172
    %v189 = vsub.f32 %v62, %v173
    %v190 = vsub.f32 %v64, %v174
    %v191 = vsub.f32 %v66, %v175
    %v192 = vsub.f32 %v68, %v176
    %v193 = vsub.f32 %v70, %v177
    %v194 = vsub.f32 %v72, %v178
    %v195 = vsub.f32 %v74, %v179
    %v196 = vsub.f32 %v76, %v180
    %v197 = vsub.f32 %v78, %v181
    %v198 = vsub.f32 %v80, %v182
    %v199 = vsub.f32 %v82, %v183
    %v200 = vsub.f32 %v84, %v184
    %v201 = vsub.f32 %v86, %v185
    %v202 = vsub.f32 %v88, %v186
    %v203 = vsub.f32 %v90, %v187
    %v204 = vsub.f32 %v61, %v172
    %v205 = vsub.f32 %v63, %v173
    %v206 = vsub.f32 %v65, %v174
    %v207 = vsub.f32 %v67, %v175
    %v208 = vsub.f32 %v69, %v176
    %v209 = vsub.f32 %v71, %v177
    %v210 = vsub.f32 %v73, %v178
    %v211 = vsub.f32 %v75, %v179
    %v212 = vsub.f32 %v77, %v180
    %v213 = vsub.f32 %v79, %v181
    %v214 = vsub.f32 %v81, %v182
    %v215 = vsub.f32 %v83, %v183
    %v216 = vsub.f32 %v85, %v184
    %v217 = vsub.f32 %v87, %v185
    %v218 = vsub.f32 %v89, %v186
    %v219 = vsub.f32 %v91, %v187
    %v220 = vmul.f32 %v188, %v188
    %v221 = vmul.f32 %v189, %v189
    %v222 = vmul.f32 %v190, %v190
    %v223 = vmul.f32 %v191, %v191
    %v224 = vmul.f32 %v192, %v192
    %v225 = vmul.f32 %v193, %v193
    %v226 = vmul.f32 %v194, %v194
    %v227 = vmul.f32 %v195, %v195
    %v228 = vmul.f32 %v196, %v196
    %v229 = vmul.f32 %v197, %v197
    %v230 = vmul.f32 %v198, %v198
    %v231 = vmul.f32 %v199, %v199
    %v232 = vmul.f32 %v200, %v200
    %v233 = vmul.f32 %v201, %v201
    %v234 = vmul.f32 %v202, %v202
    %v235 = vmul.f32 %v203, %v203
    %236 = vadd.xlane.f32.xlu0 %v220
    %v237 = vpop.xlane.xlu0 %236
    %238 = vadd.xlane.f32.xlu0 %v221
    %v239 = vpop.xlane.xlu0 %238
    %240 = vadd.xlane.f32.xlu0 %v222
    %v241 = vpop.xlane.xlu0 %240
    %242 = vadd.xlane.f32.xlu0 %v223
    %v243 = vpop.xlane.xlu0 %242
    %244 = vadd.xlane.f32.xlu0 %v224
    %v245 = vpop.xlane.xlu0 %244
    %246 = vadd.xlane.f32.xlu0 %v225
    %v247 = vpop.xlane.xlu0 %246
    %248 = vadd.xlane.f32.xlu0 %v226
    %v249 = vpop.xlane.xlu0 %248
    %250 = vadd.xlane.f32.xlu0 %v227
    %v251 = vpop.xlane.xlu0 %250
    %252 = vadd.xlane.f32.xlu0 %v228
    %v253 = vpop.xlane.xlu0 %252
    %254 = vadd.xlane.f32.xlu0 %v229
    %v255 = vpop.xlane.xlu0 %254
    %256 = vadd.xlane.f32.xlu0 %v230
    %v257 = vpop.xlane.xlu0 %256
    %258 = vadd.xlane.f32.xlu0 %v231
    %v259 = vpop.xlane.xlu0 %258
    %260 = vadd.xlane.f32.xlu0 %v232
    %v261 = vpop.xlane.xlu0 %260
    %262 = vadd.xlane.f32.xlu0 %v233
    %v263 = vpop.xlane.xlu0 %262
    %264 = vadd.xlane.f32.xlu0 %v234
    %v265 = vpop.xlane.xlu0 %264
    %266 = vadd.xlane.f32.xlu0 %v235
    %v267 = vpop.xlane.xlu0 %266
    %v268 = vmul.f32 %v204, %v204
    %v269 = vmul.f32 %v205, %v205
    %v270 = vmul.f32 %v206, %v206
    %v271 = vmul.f32 %v207, %v207
    %v272 = vmul.f32 %v208, %v208
    %v273 = vmul.f32 %v209, %v209
    %v274 = vmul.f32 %v210, %v210
    %v275 = vmul.f32 %v211, %v211
    %v276 = vmul.f32 %v212, %v212
    %v277 = vmul.f32 %v213, %v213
    %v278 = vmul.f32 %v214, %v214
    %v279 = vmul.f32 %v215, %v215
    %v280 = vmul.f32 %v216, %v216
    %v281 = vmul.f32 %v217, %v217
    %v282 = vmul.f32 %v218, %v218
    %v283 = vmul.f32 %v219, %v219
    %284 = vadd.xlane.f32.xlu0 %v268
    %v285 = vpop.xlane.xlu0 %284
    %286 = vadd.xlane.f32.xlu0 %v269
    %v287 = vpop.xlane.xlu0 %286
    %288 = vadd.xlane.f32.xlu0 %v270
    %v289 = vpop.xlane.xlu0 %288
    %290 = vadd.xlane.f32.xlu0 %v271
    %v291 = vpop.xlane.xlu0 %290
    %292 = vadd.xlane.f32.xlu0 %v272
    %v293 = vpop.xlane.xlu0 %292
    %294 = vadd.xlane.f32.xlu0 %v273
    %v295 = vpop.xlane.xlu0 %294
    %296 = vadd.xlane.f32.xlu0 %v274
    %v297 = vpop.xlane.xlu0 %296
    %298 = vadd.xlane.f32.xlu0 %v275
    %v299 = vpop.xlane.xlu0 %298
    %300 = vadd.xlane.f32.xlu0 %v276
    %v301 = vpop.xlane.xlu0 %300
    %302 = vadd.xlane.f32.xlu0 %v277
    %v303 = vpop.xlane.xlu0 %302
    %304 = vadd.xlane.f32.xlu0 %v278
    %v305 = vpop.xlane.xlu0 %304
    %306 = vadd.xlane.f32.xlu0 %v279
    %v307 = vpop.xlane.xlu0 %306
    %308 = vadd.xlane.f32.xlu0 %v280
    %v309 = vpop.xlane.xlu0 %308
    %310 = vadd.xlane.f32.xlu0 %v281
    %v311 = vpop.xlane.xlu0 %310
    %312 = vadd.xlane.f32.xlu0 %v282
    %v313 = vpop.xlane.xlu0 %312
    %314 = vadd.xlane.f32.xlu0 %v283
    %v315 = vpop.xlane.xlu0 %314
    %v316 = vadd.f32 %v237, %v285
    %v317 = vadd.f32 %v239, %v287
    %v318 = vadd.f32 %v241, %v289
    %v319 = vadd.f32 %v243, %v291
    %v320 = vadd.f32 %v245, %v293
    %v321 = vadd.f32 %v247, %v295
    %v322 = vadd.f32 %v249, %v297
    %v323 = vadd.f32 %v251, %v299
    %v324 = vadd.f32 %v253, %v301
    %v325 = vadd.f32 %v255, %v303
    %v326 = vadd.f32 %v257, %v305
    %v327 = vadd.f32 %v259, %v307
    %v328 = vadd.f32 %v261, %v309
    %v329 = vadd.f32 %v263, %v311
    %v330 = vadd.f32 %v265, %v313
    %v331 = vadd.f32 %v267, %v315
    %v332 = vmul.f32 %v316, 0.00390625
    %v333 = vmul.f32 %v317, 0.00390625
    %v334 = vmul.f32 %v318, 0.00390625
    %v335 = vmul.f32 %v319, 0.00390625
    %v336 = vmul.f32 %v320, 0.00390625
    %v337 = vmul.f32 %v321, 0.00390625
    %v338 = vmul.f32 %v322, 0.00390625
    %v339 = vmul.f32 %v323, 0.00390625
    %v340 = vmul.f32 %v324, 0.00390625
    %v341 = vmul.f32 %v325, 0.00390625
    %v342 = vmul.f32 %v326, 0.00390625
    %v343 = vmul.f32 %v327, 0.00390625
    %v344 = vmul.f32 %v328, 0.00390625
    %v345 = vmul.f32 %v329, 0.00390625
    %v346 = vmul.f32 %v330, 0.00390625
    %v347 = vmul.f32 %v331, 0.00390625
    %v348 = vadd.f32 %v332, 1e-05
    %v349 = vadd.f32 %v333, 1e-05
    %v350 = vadd.f32 %v334, 1e-05
    %v351 = vadd.f32 %v335, 1e-05
    %v352 = vadd.f32 %v336, 1e-05
    %v353 = vadd.f32 %v337, 1e-05
    %v354 = vadd.f32 %v338, 1e-05
    %v355 = vadd.f32 %v339, 1e-05
    %v356 = vadd.f32 %v340, 1e-05
    %v357 = vadd.f32 %v341, 1e-05
    %v358 = vadd.f32 %v342, 1e-05
    %v359 = vadd.f32 %v343, 1e-05
    %v360 = vadd.f32 %v344, 1e-05
    %v361 = vadd.f32 %v345, 1e-05
    %v362 = vadd.f32 %v346, 1e-05
    %v363 = vadd.f32 %v347, 1e-05
    %v364 = vrsqrt.pop %v348
    %v365 = vrsqrt.pop %v349
    %v366 = vrsqrt.pop %v350
    %v367 = vrsqrt.pop %v351
    %v368 = vrsqrt.pop %v352
    %v369 = vrsqrt.pop %v353
    %v370 = vrsqrt.pop %v354
    %v371 = vrsqrt.pop %v355
    %v372 = vrsqrt.pop %v356
    %v373 = vrsqrt.pop %v357
    %v374 = vrsqrt.pop %v358
    %v375 = vrsqrt.pop %v359
    %v376 = vrsqrt.pop %v360
    %v377 = vrsqrt.pop %v361
    %v378 = vrsqrt.pop %v362
    %v379 = vrsqrt.pop %v363
    %v380 = vmul.f32 %v188, %v364
    %v381 = vmul.f32 %v189, %v365
    %v382 = vmul.f32 %v190, %v366
    %v383 = vmul.f32 %v191, %v367
    %v384 = vmul.f32 %v192, %v368
    %v385 = vmul.f32 %v193, %v369
    %v386 = vmul.f32 %v194, %v370
    %v387 = vmul.f32 %v195, %v371
    %v388 = vmul.f32 %v196, %v372
    %v389 = vmul.f32 %v197, %v373
    %v390 = vmul.f32 %v198, %v374
    %v391 = vmul.f32 %v199, %v375
    %v392 = vmul.f32 %v200, %v376
    %v393 = vmul.f32 %v201, %v377
    %v394 = vmul.f32 %v202, %v378
    %v395 = vmul.f32 %v203, %v379
    %v396 = vpack.c.bf16 %v381, %v380
    %v397 = vpack.c.bf16 %v383, %v382
    %v398 = vpack.c.bf16 %v385, %v384
    %v399 = vpack.c.bf16 %v387, %v386
    %v400 = vpack.c.bf16 %v389, %v388
    %v401 = vpack.c.bf16 %v391, %v390
    %v402 = vpack.c.bf16 %v393, %v392
    %v403 = vpack.c.bf16 %v395, %v394
    %v404 = vld [vmem:[#allocation5] sm:$0xf]
    %v405 = vld [vmem:[#allocation5 + $0x4] sm:$0xf]
    %v406 = vld [vmem:[#allocation5 + $0x8] sm:$0xf]
    %v407 = vld [vmem:[#allocation5 + $0xc] sm:$0xf]
    %v408 = vld [vmem:[#allocation5 + $0x10] sm:$0xf]
    %v409 = vld [vmem:[#allocation5 + $0x14] sm:$0xf]
    %v410 = vld [vmem:[#allocation5 + $0x18] sm:$0xf]
    %v411 = vld [vmem:[#allocation5 + $0x1c] sm:$0xf]
    %v412 = vld [vmem:[#allocation5 + $0x20] sm:$0xf]
    %v413 = vld [vmem:[#allocation5 + $0x24] sm:$0xf]
    %v414 = vld [vmem:[#allocation5 + $0x28] sm:$0xf]
    %v415 = vld [vmem:[#allocation5 + $0x2c] sm:$0xf]
    %v416 = vld [vmem:[#allocation5 + $0x30] sm:$0xf]
    %v417 = vld [vmem:[#allocation5 + $0x34] sm:$0xf]
    %v418 = vld [vmem:[#allocation5 + $0x38] sm:$0xf]
    %v419 = vld [vmem:[#allocation5 + $0x3c] sm:$0xf]
    %v420 = vmul.f32 %v204, %v364
    %v421 = vmul.f32 %v205, %v365
    %v422 = vmul.f32 %v206, %v366
    %v423 = vmul.f32 %v207, %v367
    %v424 = vmul.f32 %v208, %v368
    %v425 = vmul.f32 %v209, %v369
    %v426 = vmul.f32 %v210, %v370
    %v427 = vmul.f32 %v211, %v371
    %v428 = vmul.f32 %v212, %v372
    %v429 = vmul.f32 %v213, %v373
    %v430 = vmul.f32 %v214, %v374
    %v431 = vmul.f32 %v215, %v375
    %v432 = vmul.f32 %v216, %v376
    %v433 = vmul.f32 %v217, %v377
    %v434 = vmul.f32 %v218, %v378
    %v435 = vmul.f32 %v219, %v379
    %v436 = vpack.c.bf16 %v421, %v420
    %v437 = vpack.c.bf16 %v423, %v422
    %v438 = vpack.c.bf16 %v425, %v424
    %v439 = vpack.c.bf16 %v427, %v426
    %v440 = vpack.c.bf16 %v429, %v428
    %v441 = vpack.c.bf16 %v431, %v430
    %v442 = vpack.c.bf16 %v433, %v432
    %v443 = vpack.c.bf16 %v435, %v434
    %v444 = vld [vmem:[#allocation7] sm:$0xf]
    %v445 = vld [vmem:[#allocation7 + $0x4] sm:$0xf]
    %v446 = vld [vmem:[#allocation7 + $0x8] sm:$0xf]
    %v447 = vld [vmem:[#allocation7 + $0xc] sm:$0xf]
    %v448 = vld [vmem:[#allocation7 + $0x10] sm:$0xf]
    %v449 = vld [vmem:[#allocation7 + $0x14] sm:$0xf]
    %v450 = vld [vmem:[#allocation7 + $0x18] sm:$0xf]
    %v451 = vld [vmem:[#allocation7 + $0x1c] sm:$0xf]
    %v452 = vld [vmem:[#allocation7 + $0x20] sm:$0xf]
    %v453 = vld [vmem:[#allocation7 + $0x24] sm:$0xf]
    %v454 = vld [vmem:[#allocation7 + $0x28] sm:$0xf]
    %v455 = vld [vmem:[#allocation7 + $0x2c] sm:$0xf]
    %v456 = vld [vmem:[#allocation7 + $0x30] sm:$0xf]
    %v457 = vld [vmem:[#allocation7 + $0x34] sm:$0xf]
    %v458 = vld [vmem:[#allocation7 + $0x38] sm:$0xf]
    %v459 = vld [vmem:[#allocation7 + $0x3c] sm:$0xf]
    %v476 = vunpack.c.l.b16 %v444
    %v477 = vunpack.c.l.b16 %v445
    %v478 = vunpack.c.l.b16 %v446
    %v479 = vunpack.c.l.b16 %v447
    %v480 = vunpack.c.l.b16 %v448
    %v481 = vunpack.c.l.b16 %v449
    %v482 = vunpack.c.l.b16 %v450
    %v483 = vunpack.c.l.b16 %v451
    %v484 = vunpack.c.l.b16 %v452
    %v485 = vunpack.c.l.b16 %v453
    %v486 = vunpack.c.l.b16 %v454
    %v487 = vunpack.c.l.b16 %v455
    %v488 = vunpack.c.l.b16 %v456
    %v489 = vunpack.c.l.b16 %v457
    %v490 = vunpack.c.l.b16 %v458
    %v491 = vunpack.c.l.b16 %v459
    %v492 = vpack.c.b16 %v477, %v476
    %v493 = vpack.c.b16 %v479, %v478
    %v494 = vpack.c.b16 %v481, %v480
    %v495 = vpack.c.b16 %v483, %v482
    %v496 = vpack.c.b16 %v485, %v484
    %v497 = vpack.c.b16 %v487, %v486
    %v498 = vpack.c.b16 %v489, %v488
    %v499 = vpack.c.b16 %v491, %v490
    %508 = vmatprep.subr.bf16.mxu0 0
    %509 = vmatpush1.bf16.msra.mxu0 %v499
    %510 = vmatprep.subr.bf16.mxu0 0
    %511 = vmatpush1.bf16.msra.mxu0 %v498
    %512 = vmatprep.subr.bf16.mxu0 0
    %513 = vmatpush1.bf16.msra.mxu0 %v497
    %514 = vmatprep.subr.bf16.mxu0 0
    %515 = vmatpush1.bf16.msra.mxu0 %v496
    %516 = vmatprep.subr.bf16.mxu0 0
    %517 = vmatpush1.bf16.msra.mxu0 %v495
    %518 = vmatprep.subr.bf16.mxu0 0
    %519 = vmatpush1.bf16.msra.mxu0 %v494
    %520 = vmatprep.subr.bf16.mxu0 0
    %521 = vmatpush1.bf16.msra.mxu0 %v493
    %522 = vmatprep.subr.bf16.mxu0 0
    %523 = vmatpush1.bf16.msra.mxu0 %v492
    %524 = vmatprep.subr.bf16.mxu0 0
    %525 = vmatpush2.bf16.msra.mxu0 0
    %526 = vmatprep.subr.bf16.mxu0 0
    %527 = vmatpush2.bf16.msra.mxu0 0
    %528 = vmatprep.subr.bf16.mxu0 0
    %529 = vmatpush2.bf16.msra.mxu0 0
    %530 = vmatprep.subr.bf16.mxu0 0
    %531 = vmatpush2.bf16.msra.mxu0 0
    %532 = vmatprep.subr.bf16.mxu0 0
    %533 = vmatpush2.bf16.msra.mxu0 0
    %534 = vmatprep.subr.bf16.mxu0 0
    %535 = vmatpush2.bf16.msra.mxu0 0
    %536 = vmatprep.subr.bf16.mxu0 0
    %537 = vmatpush2.bf16.msra.mxu0 0
    %538 = vmatprep.subr.bf16.mxu0 0
    %539 = vmatpush2.bf16.msra.mxu0 0
    %540 = vmatprep.mubr.bf16.mxu0 0
    %541 = vmatmul.mubr.bf16.gmra.mxu0 %v436
    %v542 = vpop.f32.mrf.mxu0
    %v543 = vadd.f32 0.0, %v542
    %v544 = vpop.f32.mrf.mxu0
    %v545 = vpop.f32.mrf.mxu0
    %v546 = vadd.f32 0.0, %v545
    %v547 = vpop.f32.mrf.mxu0
    %548 = vmatprep.mubr.bf16.mxu0 0
    %549 = vmatmul.mubr.bf16.gmra.mxu0 %v437
    %v550 = vpop.f32.mrf.mxu0
    %v551 = vadd.f32 0.0, %v550
    %v552 = vpop.f32.mrf.mxu0
    %v553 = vpop.f32.mrf.mxu0
    %v554 = vadd.f32 0.0, %v553
    %v555 = vpop.f32.mrf.mxu0
    %556 = vmatprep.mubr.bf16.mxu0 0
    %557 = vmatmul.mubr.bf16.gmra.mxu0 %v438
    %v558 = vpop.f32.mrf.mxu0
    %v559 = vadd.f32 0.0, %v558
    %v560 = vpop.f32.mrf.mxu0
    %v561 = vpop.f32.mrf.mxu0
    %v562 = vadd.f32 0.0, %v561
    %v563 = vpop.f32.mrf.mxu0
    %564 = vmatprep.mubr.bf16.mxu0 0
    %565 = vmatmul.mubr.bf16.gmra.mxu0 %v439
    %v566 = vpop.f32.mrf.mxu0
    %v567 = vadd.f32 0.0, %v566
    %v568 = vpop.f32.mrf.mxu0
    %v569 = vpop.f32.mrf.mxu0
    %v570 = vadd.f32 0.0, %v569
    %v571 = vpop.f32.mrf.mxu0
    %572 = vmatprep.mubr.bf16.mxu0 0
    %573 = vmatmul.mubr.bf16.gmra.mxu0 %v440
    %v574 = vpop.f32.mrf.mxu0
    %v575 = vadd.f32 0.0, %v574
    %v576 = vpop.f32.mrf.mxu0
    %v577 = vpop.f32.mrf.mxu0
    %v578 = vadd.f32 0.0, %v577
    %v579 = vpop.f32.mrf.mxu0
    %580 = vmatprep.mubr.bf16.mxu0 0
    %581 = vmatmul.mubr.bf16.gmra.mxu0 %v441
    %v582 = vpop.f32.mrf.mxu0
    %v583 = vadd.f32 0.0, %v582
    %v584 = vpop.f32.mrf.mxu0
    %v585 = vpop.f32.mrf.mxu0
    %v586 = vadd.f32 0.0, %v585
    %v587 = vpop.f32.mrf.mxu0
    %588 = vmatprep.mubr.bf16.mxu0 0
    %589 = vmatmul.mubr.bf16.gmra.mxu0 %v442
    %v590 = vpop.f32.mrf.mxu0
    %v591 = vadd.f32 0.0, %v590
    %v592 = vpop.f32.mrf.mxu0
    %v593 = vpop.f32.mrf.mxu0
    %v594 = vadd.f32 0.0, %v593
    %v595 = vpop.f32.mrf.mxu0
    %596 = vmatprep.mubr.bf16.mxu0 0
    %597 = vmatmul.mubr.bf16.gmra.mxu0 %v443
    %v598 = vpop.f32.mrf.mxu0
    %v599 = vadd.f32 0.0, %v598
    %v600 = vpop.f32.mrf.mxu0
    %v601 = vpop.f32.mrf.mxu0
    %v602 = vadd.f32 0.0, %v601
    %v603 = vpop.f32.mrf.mxu0
    %604 = vdwg.mxu0
    %v621 = vunpack.c.l.b16 %v404
    %v622 = vunpack.c.l.b16 %v405
    %v623 = vunpack.c.l.b16 %v406
    %v624 = vunpack.c.l.b16 %v407
    %v625 = vunpack.c.l.b16 %v408
    %v626 = vunpack.c.l.b16 %v409
    %v627 = vunpack.c.l.b16 %v410
    %v628 = vunpack.c.l.b16 %v411
    %v629 = vunpack.c.l.b16 %v412
    %v630 = vunpack.c.l.b16 %v413
    %v631 = vunpack.c.l.b16 %v414
    %v632 = vunpack.c.l.b16 %v415
    %v633 = vunpack.c.l.b16 %v416
    %v634 = vunpack.c.l.b16 %v417
    %v635 = vunpack.c.l.b16 %v418
    %v636 = vunpack.c.l.b16 %v419
    %v637 = vpack.c.b16 %v622, %v621
    %v638 = vpack.c.b16 %v624, %v623
    %v639 = vpack.c.b16 %v626, %v625
    %v640 = vpack.c.b16 %v628, %v627
    %v641 = vpack.c.b16 %v630, %v629
    %v642 = vpack.c.b16 %v632, %v631
    %v643 = vpack.c.b16 %v634, %v633
    %v644 = vpack.c.b16 %v636, %v635
    %653 = vmatprep.subr.bf16.mxu0 0
    %654 = vmatpush1.bf16.msra.mxu0 %v644
    %655 = vmatprep.subr.bf16.mxu0 0
    %656 = vmatpush1.bf16.msra.mxu0 %v643
    %657 = vmatprep.subr.bf16.mxu0 0
    %658 = vmatpush1.bf16.msra.mxu0 %v642
    %659 = vmatprep.subr.bf16.mxu0 0
    %660 = vmatpush1.bf16.msra.mxu0 %v641
    %661 = vmatprep.subr.bf16.mxu0 0
    %662 = vmatpush1.bf16.msra.mxu0 %v640
    %663 = vmatprep.subr.bf16.mxu0 0
    %664 = vmatpush1.bf16.msra.mxu0 %v639
    %665 = vmatprep.subr.bf16.mxu0 0
    %666 = vmatpush1.bf16.msra.mxu0 %v638
    %667 = vmatprep.subr.bf16.mxu0 0
    %668 = vmatpush1.bf16.msra.mxu0 %v637
    %669 = vmatprep.subr.bf16.mxu0 0
    %670 = vmatpush2.bf16.msra.mxu0 0
    %671 = vmatprep.subr.bf16.mxu0 0
    %672 = vmatpush2.bf16.msra.mxu0 0
    %673 = vmatprep.subr.bf16.mxu0 0
    %674 = vmatpush2.bf16.msra.mxu0 0
    %675 = vmatprep.subr.bf16.mxu0 0
    %676 = vmatpush2.bf16.msra.mxu0 0
    %677 = vmatprep.subr.bf16.mxu0 0
    %678 = vmatpush2.bf16.msra.mxu0 0
    %679 = vmatprep.subr.bf16.mxu0 0
    %680 = vmatpush2.bf16.msra.mxu0 0
    %681 = vmatprep.subr.bf16.mxu0 0
    %682 = vmatpush2.bf16.msra.mxu0 0
    %683 = vmatprep.subr.bf16.mxu0 0
    %684 = vmatpush2.bf16.msra.mxu0 0
    %685 = vmatprep.mubr.bf16.mxu0 0
    %686 = vmatmul.mubr.bf16.gmra.mxu0 %v396
    %v687 = vpop.f32.mrf.mxu0
    %v688 = vadd.f32 %v543, %v687
    %v689 = vpop.f32.mrf.mxu0
    %v690 = vpop.f32.mrf.mxu0
    %v691 = vadd.f32 %v546, %v690
    %v692 = vpop.f32.mrf.mxu0
    %693 = vmatprep.mubr.bf16.mxu0 0
    %694 = vmatmul.mubr.bf16.gmra.mxu0 %v397
    %v695 = vpop.f32.mrf.mxu0
    %v696 = vadd.f32 %v551, %v695
    %v697 = vpop.f32.mrf.mxu0
    %v698 = vpop.f32.mrf.mxu0
    %v699 = vadd.f32 %v554, %v698
    %v700 = vpop.f32.mrf.mxu0
    %701 = vmatprep.mubr.bf16.mxu0 0
    %702 = vmatmul.mubr.bf16.gmra.mxu0 %v398
    %v703 = vpop.f32.mrf.mxu0
    %v704 = vadd.f32 %v559, %v703
    %v705 = vpop.f32.mrf.mxu0
    %v706 = vpop.f32.mrf.mxu0
    %v707 = vadd.f32 %v562, %v706
    %v708 = vpop.f32.mrf.mxu0
    %709 = vmatprep.mubr.bf16.mxu0 0
    %710 = vmatmul.mubr.bf16.gmra.mxu0 %v399
    %v711 = vpop.f32.mrf.mxu0
    %v712 = vadd.f32 %v567, %v711
    %v713 = vpop.f32.mrf.mxu0
    %v714 = vpop.f32.mrf.mxu0
    %v715 = vadd.f32 %v570, %v714
    %v716 = vpop.f32.mrf.mxu0
    %717 = vmatprep.mubr.bf16.mxu0 0
    %718 = vmatmul.mubr.bf16.gmra.mxu0 %v400
    %v719 = vpop.f32.mrf.mxu0
    %v720 = vadd.f32 %v575, %v719
    %v721 = vpop.f32.mrf.mxu0
    %v722 = vpop.f32.mrf.mxu0
    %v723 = vadd.f32 %v578, %v722
    %v724 = vpop.f32.mrf.mxu0
    %725 = vmatprep.mubr.bf16.mxu0 0
    %726 = vmatmul.mubr.bf16.gmra.mxu0 %v401
    %v727 = vpop.f32.mrf.mxu0
    %v728 = vadd.f32 %v583, %v727
    %v729 = vpop.f32.mrf.mxu0
    %v730 = vpop.f32.mrf.mxu0
    %v731 = vadd.f32 %v586, %v730
    %v732 = vpop.f32.mrf.mxu0
    %733 = vmatprep.mubr.bf16.mxu0 0
    %734 = vmatmul.mubr.bf16.gmra.mxu0 %v402
    %v735 = vpop.f32.mrf.mxu0
    %v736 = vadd.f32 %v591, %v735
    %v737 = vpop.f32.mrf.mxu0
    %v738 = vpop.f32.mrf.mxu0
    %v739 = vadd.f32 %v594, %v738
    %v740 = vpop.f32.mrf.mxu0
    %741 = vmatprep.mubr.bf16.mxu0 0
    %742 = vmatmul.mubr.bf16.gmra.mxu0 %v403
    %v743 = vpop.f32.mrf.mxu0
    %v744 = vadd.f32 %v599, %v743
    %v745 = vpop.f32.mrf.mxu0
    %v746 = vpop.f32.mrf.mxu0
    %v747 = vadd.f32 %v602, %v746
    %v748 = vpop.f32.mrf.mxu0
    %749 = vdwg.mxu0
    %v750 = vld [vmem:[%s3] sm:$0x1]
    %v752 = vlaneseq
    %v753 = vshrl.u32 %v752, 7
    %v754 = vsub.s32 0, %v753
    %v755 = vrot.slane %v750, %v754
    %v757 = vadd.f32 %v688, %v755
    %v758 = vadd.f32 %v691, %v755
    %v759 = vadd.f32 %v696, %v755
    %v760 = vadd.f32 %v699, %v755
    %v761 = vadd.f32 %v704, %v755
    %v762 = vadd.f32 %v707, %v755
    %v763 = vadd.f32 %v712, %v755
    %v764 = vadd.f32 %v715, %v755
    %v765 = vadd.f32 %v720, %v755
    %v766 = vadd.f32 %v723, %v755
    %v767 = vadd.f32 %v728, %v755
    %v768 = vadd.f32 %v731, %v755
    %v769 = vadd.f32 %v736, %v755
    %v770 = vadd.f32 %v739, %v755
    %v771 = vadd.f32 %v744, %v755
    %v772 = vadd.f32 %v747, %v755
    %773 = vst [vmem:[#allocation8] sm:$0xff] %v757
    %774 = vst [vmem:[#allocation8 + $0x8] sm:$0xff] %v758
    %775 = vst [vmem:[#allocation8 + $0x10] sm:$0xff] %v759
    %776 = vst [vmem:[#allocation8 + $0x18] sm:$0xff] %v760
    %777 = vst [vmem:[#allocation8 + $0x20] sm:$0xff] %v761
    %778 = vst [vmem:[#allocation8 + $0x28] sm:$0xff] %v762
    %779 = vst [vmem:[#allocation8 + $0x30] sm:$0xff] %v763
    %780 = vst [vmem:[#allocation8 + $0x38] sm:$0xff] %v764
    %781 = vst [vmem:[#allocation8 + $0x40] sm:$0xff] %v765
    %782 = vst [vmem:[#allocation8 + $0x48] sm:$0xff] %v766
    %783 = vst [vmem:[#allocation8 + $0x50] sm:$0xff] %v767
    %784 = vst [vmem:[#allocation8 + $0x58] sm:$0xff] %v768
    %785 = vst [vmem:[#allocation8 + $0x60] sm:$0xff] %v769
    %786 = vst [vmem:[#allocation8 + $0x68] sm:$0xff] %v770
    %787 = vst [vmem:[#allocation8 + $0x70] sm:$0xff] %v771
    %788 = vst [vmem:[#allocation8 + $0x78] sm:$0xff] %v772
    // Predicated region
    $region30: #{tpu_custom_call.1} parent=1 // pred_check
      _
    $region31: #{tpu_custom_call.1} parent=1 // pred_check_branch
      %790 = sbr.rel (0) target = $region33
    $region32: #{tpu_custom_call.1} parent=1 // pred_region
      %s792 = ssub.s32 2048, 2048
      %793 = vsyncadd [#allocation4], %s792
      %s794 = sshll.u32 [#allocation8], 4
      %s795 = int_to_ptr.vmem [resolvable:$true] %s794
      %800 = dma.vmem_to_hbm [thread:$0]  %s795, 2048, %s4, [#allocation4], 128, 128, 8
    $region33: #{tpu_custom_call.1} parent=1 // pred_fallthru
      _
    // Predicated region
    $region34: #{tpu_custom_call.1} parent=1 // pred_check
      _
    $region35: #{tpu_custom_call.1} parent=1 // pred_check_branch
      %802 = sbr.rel (0) target = $region37
    $region36: #{tpu_custom_call.1} parent=1 // pred_region
      %803 = dma.done [#allocation4], 2048
    $region37: #{tpu_custom_call.1} parent=1 // pred_fallthru
      _
    %804 = vsyncpa [#allocation3], 1
    %805 = vsyncpa [#allocation6], 1
    %806 = vsyncpa [#allocation4], 1

// kernel: tpu_custom_call.1
$region0: #{tpu_custom_call.1}
  #allocation0 [shape = 'u32[]', space=smem, size = 0x4, offset = 0x4, fixed_abs, tag = 'smem constant byte address 0x4 - core index']
  #allocation1 [shape = 'u32[144,128]{1,0:T(1,128)}', space=vmem, size = 0x12000, scoped, tag = 'internal scratch']
  %s0 = inlined_call_operand.hbm [shape: f32[16,2,8,128], index: 0, kind: input, shape index: {}]
  %s1 = inlined_call_operand.hbm [shape: bf16[128,128], index: 1, kind: input, shape index: {}]
  %s2 = inlined_call_operand.hbm [shape: bf16[128,128], index: 2, kind: input, shape index: {}]
  %s3 = inlined_call_operand.vmem [shape: f32[1,128], index: 3, kind: input, shape index: {}]
  %s4 = inlined_call_operand.hbm [shape: f32[16,8,128], index: 4, kind: output, shape index: {}]
  %s5 = sld [smem:[#allocation0]]
  $region38: #{tpu_custom_call.1} parent=0
    _
  %s7 = ssub.s32 1, %s5
  %s8 = scalar_select 0, %s7, %s5
  $region1: #{tpu_custom_call.1} parent=0
    #allocation2 [shape = 'u8[131072]{0}', space=vmem, size = 0x20000, scoped, tag = 'input window, operand 0, single buffered']
    #allocation3 [shape = 's32[1]{0}', space=sflag, size = 0x4, scoped, tag = 'scoped memory for tpu_custom_call.1']
    #allocation4 [shape = 's32[1]{0}', space=sflag, size = 0x4, scoped, tag = 'scoped memory for tpu_custom_call.1']
    #allocation5 [shape = 'u8[32768]{0}', space=vmem, size = 0x8000, scoped, tag = 'input window, operand 1, single buffered']
    #allocation6 [shape = 's32[1]{0}', space=sflag, size = 0x4, scoped, tag = 'scoped memory for tpu_custom_call.1']
    #allocation7 [shape = 'u8[32768]{0}', space=vmem, size = 0x8000, scoped, tag = 'input window, operand 2, single buffered']
    #allocation8 [shape = 'u8[65536]{0}', space=vmem, size = 0x10000, scoped, tag = 'output window, operand 0, single buffered']
    %9 = vsyncpa [#allocation3], 0
    %10 = vsyncpa [#allocation6], 0
    %11 = vsyncpa [#allocation4], 0
    // Predicated region
    $region2: #{tpu_custom_call.1} parent=1 // pred_check
      _
    $region3: #{tpu_custom_call.1} parent=1 // pred_check_branch
      %13 = sbr.rel (0) target = $region5
    $region4: #{tpu_custom_call.1} parent=1 // pred_region
      %s15 = ssub.s32 4096, 4096
      %16 = vsyncadd [#allocation3], %s15
      %s17 = sshll.u32 [#allocation2], 4
      %s18 = int_to_ptr.vmem [resolvable:$true] %s17
      %23 = dma.hbm_to_vmem [thread:$0]  %s0, 4096, %s18, [#allocation3], 128, 128, 8
    $region5: #{tpu_custom_call.1} parent=1 // pred_fallthru
      _
    // Predicated region
    $region6: #{tpu_custom_call.1} parent=1 // pred_check
      _
    $region7: #{tpu_custom_call.1} parent=1 // pred_check_branch
      %25 = sbr.rel (0) target = $region9
    $region8: #{tpu_custom_call.1} parent=1 // pred_region
      %s27 = ssub.s32 1024, 1024
      %28 = vsyncadd [#allocation6], %s27
      %s29 = sshll.u32 [#allocation5], 4
      %s30 = int_to_ptr.vmem [resolvable:$true] %s29
      %35 = dma.hbm_to_vmem [thread:$0]  %s1, 1024, %s30, [#allocation6], 64, 64, 4
    $region9: #{tpu_custom_call.1} parent=1 // pred_fallthru
      _
    // Predicated region
    $region10: #{tpu_custom_call.1} parent=1 // pred_check
      _
    $region11: #{tpu_custom_call.1} parent=1 // pred_check_branch
      %37 = sbr.rel (0) target = $region13
    $region12: #{tpu_custom_call.1} parent=1 // pred_region
      %s39 = ssub.s32 1024, 1024
      %40 = vsyncadd [#allocation6], %s39
      %s41 = sshll.u32 [#allocation7], 4
      %s42 = int_to_ptr.vmem [resolvable:$true] %s41
      %47 = dma.hbm_to_vmem [thread:$0]  %s2, 1024, %s42, [#allocation6], 64, 64, 4
    $region13: #{tpu_custom_call.1} parent=1 // pred_fallthru
      _
    // Predicated region
    $region14: #{tpu_custom_call.1} parent=1 // pred_check
      _
    $region15: #{tpu_custom_call.1} parent=1 // pred_check_branch
      %49 = sbr.rel (0) target = $region17
    $region16: #{tpu_custom_call.1} parent=1 // pred_region
      _
    $region17: #{tpu_custom_call.1} parent=1 // pred_fallthru
      _
    // Predicated region
    $region18: #{tpu_custom_call.1} parent=1 // pred_check
      _
    $region19: #{tpu_custom_call.1} parent=1 // pred_check_branch
      %51 = sbr.rel (0) target = $region21
    $region20: #{tpu_custom_call.1} parent=1 // pred_region
      %52 = dma.done [#allocation3], 4096
    $region21: #{tpu_custom_call.1} parent=1 // pred_fallthru
      _
    // Predicated region
    $region22: #{tpu_custom_call.1} parent=1 // pred_check
      _
    $region23: #{tpu_custom_call.1} parent=1 // pred_check_branch
      %54 = sbr.rel (0) target = $region25
    $region24: #{tpu_custom_call.1} parent=1 // pred_region
      %55 = dma.done [#allocation6], 1024
    $region25: #{tpu_custom_call.1} parent=1 // pred_fallthru
      _
    // Predicated region
    $region26: #{tpu_custom_call.1} parent=1 // pred_check
      _
    $region27: #{tpu_custom_call.1} parent=1 // pred_check_branch
      %57 = sbr.rel (0) target = $region29
    $region28: #{tpu_custom_call.1} parent=1 // pred_region
      %58 = dma.done [#allocation6], 1024
    $region29: #{tpu_custom_call.1} parent=1 // pred_fallthru
      _
    %v60 = vld [vmem:[#allocation2] sm:$0xff]
    %v61 = vld [vmem:[#allocation2 + $0x8] sm:$0xff]
    %v62 = vld [vmem:[#allocation2 + $0x10] sm:$0xff]
    %v63 = vld [vmem:[#allocation2 + $0x18] sm:$0xff]
    %v64 = vld [vmem:[#allocation2 + $0x20] sm:$0xff]
    %v65 = vld [vmem:[#allocation2 + $0x28] sm:$0xff]
    %v66 = vld [vmem:[#allocation2 + $0x30] sm:$0xff]
    %v67 = vld [vmem:[#allocation2 + $0x38] sm:$0xff]
    %v68 = vld [vmem:[#allocation2 + $0x40] sm:$0xff]
    %v69 = vld [vmem:[#allocation2 + $0x48] sm:$0xff]
    %v70 = vld [vmem:[#allocation2 + $0x50] sm:$0xff]
    %v71 = vld [vmem:[#allocation2 + $0x58] sm:$0xff]
    %v72 = vld [vmem:[#allocation2 + $0x60] sm:$0xff]
    %v73 = vld [vmem:[#allocation2 + $0x68] sm:$0xff]
    %v74 = vld [vmem:[#allocation2 + $0x70] sm:$0xff]
    %v75 = vld [vmem:[#allocation2 + $0x78] sm:$0xff]
    %v76 = vld [vmem:[#allocation2 + $0x80] sm:$0xff]
    %v77 = vld [vmem:[#allocation2 + $0x88] sm:$0xff]
    %v78 = vld [vmem:[#allocation2 + $0x90] sm:$0xff]
    %v79 = vld [vmem:[#allocation2 + $0x98] sm:$0xff]
    %v80 = vld [vmem:[#allocation2 + $0xa0] sm:$0xff]
    %v81 = vld [vmem:[#allocation2 + $0xa8] sm:$0xff]
    %v82 = vld [vmem:[#allocation2 + $0xb0] sm:$0xff]
    %v83 = vld [vmem:[#allocation2 + $0xb8] sm:$0xff]
    %v84 = vld [vmem:[#allocation2 + $0xc0] sm:$0xff]
    %v85 = vld [vmem:[#allocation2 + $0xc8] sm:$0xff]
    %v86 = vld [vmem:[#allocation2 + $0xd0] sm:$0xff]
    %v87 = vld [vmem:[#allocation2 + $0xd8] sm:$0xff]
    %v88 = vld [vmem:[#allocation2 + $0xe0] sm:$0xff]
    %v89 = vld [vmem:[#allocation2 + $0xe8] sm:$0xff]
    %v90 = vld [vmem:[#allocation2 + $0xf0] sm:$0xff]
    %v91 = vld [vmem:[#allocation2 + $0xf8] sm:$0xff]
    %92 = vadd.xlane.f32.xlu0 %v60
    %v93 = vpop.xlane.xlu0 %92
    %94 = vadd.xlane.f32.xlu0 %v62
    %v95 = vpop.xlane.xlu0 %94
    %96 = vadd.xlane.f32.xlu0 %v64
    %v97 = vpop.xlane.xlu0 %96
    %98 = vadd.xlane.f32.xlu0 %v66
    %v99 = vpop.xlane.xlu0 %98
    %100 = vadd.xlane.f32.xlu0 %v68
    %v101 = vpop.xlane.xlu0 %100
    %102 = vadd.xlane.f32.xlu0 %v70
    %v103 = vpop.xlane.xlu0 %102
    %104 = vadd.xlane.f32.xlu0 %v72
    %v105 = vpop.xlane.xlu0 %104
    %106 = vadd.xlane.f32.xlu0 %v74
    %v107 = vpop.xlane.xlu0 %106
    %108 = vadd.xlane.f32.xlu0 %v76
    %v109 = vpop.xlane.xlu0 %108
    %110 = vadd.xlane.f32.xlu0 %v78
    %v111 = vpop.xlane.xlu0 %110
    %112 = vadd.xlane.f32.xlu0 %v80
    %v113 = vpop.xlane.xlu0 %112
    %114 = vadd.xlane.f32.xlu0 %v82
    %v115 = vpop.xlane.xlu0 %114
    %116 = vadd.xlane.f32.xlu0 %v84
    %v117 = vpop.xlane.xlu0 %116
    %118 = vadd.xlane.f32.xlu0 %v86
    %v119 = vpop.xlane.xlu0 %118
    %120 = vadd.xlane.f32.xlu0 %v88
    %v121 = vpop.xlane.xlu0 %120
    %122 = vadd.xlane.f32.xlu0 %v90
    %v123 = vpop.xlane.xlu0 %122
    %124 = vadd.xlane.f32.xlu0 %v61
    %v125 = vpop.xlane.xlu0 %124
    %126 = vadd.xlane.f32.xlu0 %v63
    %v127 = vpop.xlane.xlu0 %126
    %128 = vadd.xlane.f32.xlu0 %v65
    %v129 = vpop.xlane.xlu0 %128
    %130 = vadd.xlane.f32.xlu0 %v67
    %v131 = vpop.xlane.xlu0 %130
    %132 = vadd.xlane.f32.xlu0 %v69
    %v133 = vpop.xlane.xlu0 %132
    %134 = vadd.xlane.f32.xlu0 %v71
    %v135 = vpop.xlane.xlu0 %134
    %136 = vadd.xlane.f32.xlu0 %v73
    %v137 = vpop.xlane.xlu0 %136
    %138 = vadd.xlane.f32.xlu0 %v75
    %v139 = vpop.xlane.xlu0 %138
    %140 = vadd.xlane.f32.xlu0 %v77
    %v141 = vpop.xlane.xlu0 %140
    %142 = vadd.xlane.f32.xlu0 %v79
    %v143 = vpop.xlane.xlu0 %142
    %144 = vadd.xlane.f32.xlu0 %v81
    %v145 = vpop.xlane.xlu0 %144
    %146 = vadd.xlane.f32.xlu0 %v83
    %v147 = vpop.xlane.xlu0 %146
    %148 = vadd.xlane.f32.xlu0 %v85
    %v149 = vpop.xlane.xlu0 %148
    %150 = vadd.xlane.f32.xlu0 %v87
    %v151 = vpop.xlane.xlu0 %150
    %152 = vadd.xlane.f32.xlu0 %v89
    %v153 = vpop.xlane.xlu0 %152
    %154 = vadd.xlane.f32.xlu0 %v91
    %v155 = vpop.xlane.xlu0 %154
    %v156 = vadd.f32 %v93, %v125
    %v157 = vadd.f32 %v95, %v127
    %v158 = vadd.f32 %v97, %v129
    %v159 = vadd.f32 %v99, %v131
    %v160 = vadd.f32 %v101, %v133
    %v161 = vadd.f32 %v103, %v135
    %v162 = vadd.f32 %v105, %v137
    %v163 = vadd.f32 %v107, %v139
    %v164 = vadd.f32 %v109, %v141
    %v165 = vadd.f32 %v111, %v143
    %v166 = vadd.f32 %v113, %v145
    %v167 = vadd.f32 %v115, %v147
    %v168 = vadd.f32 %v117, %v149
    %v169 = vadd.f32 %v119, %v151
    %v170 = vadd.f32 %v121, %v153
    %v171 = vadd.f32 %v123, %v155
    %v172 = vmul.f32 %v156, 0.00390625
    %v173 = vmul.f32 %v157, 0.00390625
    %v174 = vmul.f32 %v158, 0.00390625
    %v175 = vmul.f32 %v159, 0.00390625
    %v176 = vmul.f32 %v160, 0.00390625
    %v177 = vmul.f32 %v161, 0.00390625
    %v178 = vmul.f32 %v162, 0.00390625
    %v179 = vmul.f32 %v163, 0.00390625
    %v180 = vmul.f32 %v164, 0.00390625
    %v181 = vmul.f32 %v165, 0.00390625
    %v182 = vmul.f32 %v166, 0.00390625
    %v183 = vmul.f32 %v167, 0.00390625
    %v184 = vmul.f32 %v168, 0.00390625
    %v185 = vmul.f32 %v169, 0.00390625
    %v186 = vmul.f32 %v170, 0.00390625
    %v187 = vmul.f32 %v171, 0.00390625
    %v188 = vsub.f32 %v60, %v172
    %v189 = vsub.f32 %v62, %v173
    %v190 = vsub.f32 %v64, %v174
    %v191 = vsub.f32 %v66, %v175
    %v192 = vsub.f32 %v68, %v176
    %v193 = vsub.f32 %v70, %v177
    %v194 = vsub.f32 %v72, %v178
    %v195 = vsub.f32 %v74, %v179
    %v196 = vsub.f32 %v76, %v180
    %v197 = vsub.f32 %v78, %v181
    %v198 = vsub.f32 %v80, %v182
    %v199 = vsub.f32 %v82, %v183
    %v200 = vsub.f32 %v84, %v184
    %v201 = vsub.f32 %v86, %v185
    %v202 = vsub.f32 %v88, %v186
    %v203 = vsub.f32 %v90, %v187
    %v204 = vsub.f32 %v61, %v172
    %v205 = vsub.f32 %v63, %v173
    %v206 = vsub.f32 %v65, %v174
    %v207 = vsub.f32 %v67, %v175
    %v208 = vsub.f32 %v69, %v176
    %v209 = vsub.f32 %v71, %v177
    %v210 = vsub.f32 %v73, %v178
    %v211 = vsub.f32 %v75, %v179
    %v212 = vsub.f32 %v77, %v180
    %v213 = vsub.f32 %v79, %v181
    %v214 = vsub.f32 %v81, %v182
    %v215 = vsub.f32 %v83, %v183
    %v216 = vsub.f32 %v85, %v184
    %v217 = vsub.f32 %v87, %v185
    %v218 = vsub.f32 %v89, %v186
    %v219 = vsub.f32 %v91, %v187
    %v220 = vmul.f32 %v188, %v188
    %v221 = vmul.f32 %v189, %v189
    %v222 = vmul.f32 %v190, %v190
    %v223 = vmul.f32 %v191, %v191
    %v224 = vmul.f32 %v192, %v192
    %v225 = vmul.f32 %v193, %v193
    %v226 = vmul.f32 %v194, %v194
    %v227 = vmul.f32 %v195, %v195
    %v228 = vmul.f32 %v196, %v196
    %v229 = vmul.f32 %v197, %v197
    %v230 = vmul.f32 %v198, %v198
    %v231 = vmul.f32 %v199, %v199
    %v232 = vmul.f32 %v200, %v200
    %v233 = vmul.f32 %v201, %v201
    %v234 = vmul.f32 %v202, %v202
    %v235 = vmul.f32 %v203, %v203
    %236 = vadd.xlane.f32.xlu0 %v220
    %v237 = vpop.xlane.xlu0 %236
    %238 = vadd.xlane.f32.xlu0 %v221
    %v239 = vpop.xlane.xlu0 %238
    %240 = vadd.xlane.f32.xlu0 %v222
    %v241 = vpop.xlane.xlu0 %240
    %242 = vadd.xlane.f32.xlu0 %v223
    %v243 = vpop.xlane.xlu0 %242
    %244 = vadd.xlane.f32.xlu0 %v224
    %v245 = vpop.xlane.xlu0 %244
    %246 = vadd.xlane.f32.xlu0 %v225
    %v247 = vpop.xlane.xlu0 %246
    %248 = vadd.xlane.f32.xlu0 %v226
    %v249 = vpop.xlane.xlu0 %248
    %250 = vadd.xlane.f32.xlu0 %v227
    %v251 = vpop.xlane.xlu0 %250
    %252 = vadd.xlane.f32.xlu0 %v228
    %v253 = vpop.xlane.xlu0 %252
    %254 = vadd.xlane.f32.xlu0 %v229
    %v255 = vpop.xlane.xlu0 %254
    %256 = vadd.xlane.f32.xlu0 %v230
    %v257 = vpop.xlane.xlu0 %256
    %258 = vadd.xlane.f32.xlu0 %v231
    %v259 = vpop.xlane.xlu0 %258
    %260 = vadd.xlane.f32.xlu0 %v232
    %v261 = vpop.xlane.xlu0 %260
    %262 = vadd.xlane.f32.xlu0 %v233
    %v263 = vpop.xlane.xlu0 %262
    %264 = vadd.xlane.f32.xlu0 %v234
    %v265 = vpop.xlane.xlu0 %264
    %266 = vadd.xlane.f32.xlu0 %v235
    %v267 = vpop.xlane.xlu0 %266
    %v268 = vmul.f32 %v204, %v204
    %v269 = vmul.f32 %v205, %v205
    %v270 = vmul.f32 %v206, %v206
    %v271 = vmul.f32 %v207, %v207
    %v272 = vmul.f32 %v208, %v208
    %v273 = vmul.f32 %v209, %v209
    %v274 = vmul.f32 %v210, %v210
    %v275 = vmul.f32 %v211, %v211
    %v276 = vmul.f32 %v212, %v212
    %v277 = vmul.f32 %v213, %v213
    %v278 = vmul.f32 %v214, %v214
    %v279 = vmul.f32 %v215, %v215
    %v280 = vmul.f32 %v216, %v216
    %v281 = vmul.f32 %v217, %v217
    %v282 = vmul.f32 %v218, %v218
    %v283 = vmul.f32 %v219, %v219
    %284 = vadd.xlane.f32.xlu0 %v268
    %v285 = vpop.xlane.xlu0 %284
    %286 = vadd.xlane.f32.xlu0 %v269
    %v287 = vpop.xlane.xlu0 %286
    %288 = vadd.xlane.f32.xlu0 %v270
    %v289 = vpop.xlane.xlu0 %288
    %290 = vadd.xlane.f32.xlu0 %v271
    %v291 = vpop.xlane.xlu0 %290
    %292 = vadd.xlane.f32.xlu0 %v272
    %v293 = vpop.xlane.xlu0 %292
    %294 = vadd.xlane.f32.xlu0 %v273
    %v295 = vpop.xlane.xlu0 %294
    %296 = vadd.xlane.f32.xlu0 %v274
    %v297 = vpop.xlane.xlu0 %296
    %298 = vadd.xlane.f32.xlu0 %v275
    %v299 = vpop.xlane.xlu0 %298
    %300 = vadd.xlane.f32.xlu0 %v276
    %v301 = vpop.xlane.xlu0 %300
    %302 = vadd.xlane.f32.xlu0 %v277
    %v303 = vpop.xlane.xlu0 %302
    %304 = vadd.xlane.f32.xlu0 %v278
    %v305 = vpop.xlane.xlu0 %304
    %306 = vadd.xlane.f32.xlu0 %v279
    %v307 = vpop.xlane.xlu0 %306
    %308 = vadd.xlane.f32.xlu0 %v280
    %v309 = vpop.xlane.xlu0 %308
    %310 = vadd.xlane.f32.xlu0 %v281
    %v311 = vpop.xlane.xlu0 %310
    %312 = vadd.xlane.f32.xlu0 %v282
    %v313 = vpop.xlane.xlu0 %312
    %314 = vadd.xlane.f32.xlu0 %v283
    %v315 = vpop.xlane.xlu0 %314
    %v316 = vadd.f32 %v237, %v285
    %v317 = vadd.f32 %v239, %v287
    %v318 = vadd.f32 %v241, %v289
    %v319 = vadd.f32 %v243, %v291
    %v320 = vadd.f32 %v245, %v293
    %v321 = vadd.f32 %v247, %v295
    %v322 = vadd.f32 %v249, %v297
    %v323 = vadd.f32 %v251, %v299
    %v324 = vadd.f32 %v253, %v301
    %v325 = vadd.f32 %v255, %v303
    %v326 = vadd.f32 %v257, %v305
    %v327 = vadd.f32 %v259, %v307
    %v328 = vadd.f32 %v261, %v309
    %v329 = vadd.f32 %v263, %v311
    %v330 = vadd.f32 %v265, %v313
    %v331 = vadd.f32 %v267, %v315
    %v332 = vmul.f32 %v316, 0.00390625
    %v333 = vmul.f32 %v317, 0.00390625
    %v334 = vmul.f32 %v318, 0.00390625
    %v335 = vmul.f32 %v319, 0.00390625
    %v336 = vmul.f32 %v320, 0.00390625
    %v337 = vmul.f32 %v321, 0.00390625
    %v338 = vmul.f32 %v322, 0.00390625
    %v339 = vmul.f32 %v323, 0.00390625
    %v340 = vmul.f32 %v324, 0.00390625
    %v341 = vmul.f32 %v325, 0.00390625
    %v342 = vmul.f32 %v326, 0.00390625
    %v343 = vmul.f32 %v327, 0.00390625
    %v344 = vmul.f32 %v328, 0.00390625
    %v345 = vmul.f32 %v329, 0.00390625
    %v346 = vmul.f32 %v330, 0.00390625
    %v347 = vmul.f32 %v331, 0.00390625
    %v348 = vadd.f32 %v332, 1e-05
    %v349 = vadd.f32 %v333, 1e-05
    %v350 = vadd.f32 %v334, 1e-05
    %v351 = vadd.f32 %v335, 1e-05
    %v352 = vadd.f32 %v336, 1e-05
    %v353 = vadd.f32 %v337, 1e-05
    %v354 = vadd.f32 %v338, 1e-05
    %v355 = vadd.f32 %v339, 1e-05
    %v356 = vadd.f32 %v340, 1e-05
    %v357 = vadd.f32 %v341, 1e-05
    %v358 = vadd.f32 %v342, 1e-05
    %v359 = vadd.f32 %v343, 1e-05
    %v360 = vadd.f32 %v344, 1e-05
    %v361 = vadd.f32 %v345, 1e-05
    %v362 = vadd.f32 %v346, 1e-05
    %v363 = vadd.f32 %v347, 1e-05
    %v364 = vrsqrt.pop %v348
    %v365 = vrsqrt.pop %v349
    %v366 = vrsqrt.pop %v350
    %v367 = vrsqrt.pop %v351
    %v368 = vrsqrt.pop %v352
    %v369 = vrsqrt.pop %v353
    %v370 = vrsqrt.pop %v354
    %v371 = vrsqrt.pop %v355
    %v372 = vrsqrt.pop %v356
    %v373 = vrsqrt.pop %v357
    %v374 = vrsqrt.pop %v358
    %v375 = vrsqrt.pop %v359
    %v376 = vrsqrt.pop %v360
    %v377 = vrsqrt.pop %v361
    %v378 = vrsqrt.pop %v362
    %v379 = vrsqrt.pop %v363
    %v380 = vmul.f32 %v188, %v364
    %v381 = vmul.f32 %v189, %v365
    %v382 = vmul.f32 %v190, %v366
    %v383 = vmul.f32 %v191, %v367
    %v384 = vmul.f32 %v192, %v368
    %v385 = vmul.f32 %v193, %v369
    %v386 = vmul.f32 %v194, %v370
    %v387 = vmul.f32 %v195, %v371
    %v388 = vmul.f32 %v196, %v372
    %v389 = vmul.f32 %v197, %v373
    %v390 = vmul.f32 %v198, %v374
    %v391 = vmul.f32 %v199, %v375
    %v392 = vmul.f32 %v200, %v376
    %v393 = vmul.f32 %v201, %v377
    %v394 = vmul.f32 %v202, %v378
    %v395 = vmul.f32 %v203, %v379
    %v396 = vpack.c.bf16 %v381, %v380
    %v397 = vpack.c.bf16 %v383, %v382
    %v398 = vpack.c.bf16 %v385, %v384
    %v399 = vpack.c.bf16 %v387, %v386
    %v400 = vpack.c.bf16 %v389, %v388
    %v401 = vpack.c.bf16 %v391, %v390
    %v402 = vpack.c.bf16 %v393, %v392
    %v403 = vpack.c.bf16 %v395, %v394
    %v404 = vld [vmem:[#allocation5] sm:$0xf]
    %v405 = vld [vmem:[#allocation5 + $0x4] sm:$0xf]
    %v406 = vld [vmem:[#allocation5 + $0x8] sm:$0xf]
    %v407 = vld [vmem:[#allocation5 + $0xc] sm:$0xf]
    %v408 = vld [vmem:[#allocation5 + $0x10] sm:$0xf]
    %v409 = vld [vmem:[#allocation5 + $0x14] sm:$0xf]
    %v410 = vld [vmem:[#allocation5 + $0x18] sm:$0xf]
    %v411 = vld [vmem:[#allocation5 + $0x1c] sm:$0xf]
    %v412 = vld [vmem:[#allocation5 + $0x20] sm:$0xf]
    %v413 = vld [vmem:[#allocation5 + $0x24] sm:$0xf]
    %v414 = vld [vmem:[#allocation5 + $0x28] sm:$0xf]
    %v415 = vld [vmem:[#allocation5 + $0x2c] sm:$0xf]
    %v416 = vld [vmem:[#allocation5 + $0x30] sm:$0xf]
    %v417 = vld [vmem:[#allocation5 + $0x34] sm:$0xf]
    %v418 = vld [vmem:[#allocation5 + $0x38] sm:$0xf]
    %v419 = vld [vmem:[#allocation5 + $0x3c] sm:$0xf]
    %v420 = vmul.f32 %v204, %v364
    %v421 = vmul.f32 %v205, %v365
    %v422 = vmul.f32 %v206, %v366
    %v423 = vmul.f32 %v207, %v367
    %v424 = vmul.f32 %v208, %v368
    %v425 = vmul.f32 %v209, %v369
    %v426 = vmul.f32 %v210, %v370
    %v427 = vmul.f32 %v211, %v371
    %v428 = vmul.f32 %v212, %v372
    %v429 = vmul.f32 %v213, %v373
    %v430 = vmul.f32 %v214, %v374
    %v431 = vmul.f32 %v215, %v375
    %v432 = vmul.f32 %v216, %v376
    %v433 = vmul.f32 %v217, %v377
    %v434 = vmul.f32 %v218, %v378
    %v435 = vmul.f32 %v219, %v379
    %v436 = vpack.c.bf16 %v421, %v420
    %v437 = vpack.c.bf16 %v423, %v422
    %v438 = vpack.c.bf16 %v425, %v424
    %v439 = vpack.c.bf16 %v427, %v426
    %v440 = vpack.c.bf16 %v429, %v428
    %v441 = vpack.c.bf16 %v431, %v430
    %v442 = vpack.c.bf16 %v433, %v432
    %v443 = vpack.c.bf16 %v435, %v434
    %v444 = vld [vmem:[#allocation7] sm:$0xf]
    %v445 = vld [vmem:[#allocation7 + $0x4] sm:$0xf]
    %v446 = vld [vmem:[#allocation7 + $0x8] sm:$0xf]
    %v447 = vld [vmem:[#allocation7 + $0xc] sm:$0xf]
    %v448 = vld [vmem:[#allocation7 + $0x10] sm:$0xf]
    %v449 = vld [vmem:[#allocation7 + $0x14] sm:$0xf]
    %v450 = vld [vmem:[#allocation7 + $0x18] sm:$0xf]
    %v451 = vld [vmem:[#allocation7 + $0x1c] sm:$0xf]
    %v452 = vld [vmem:[#allocation7 + $0x20] sm:$0xf]
    %v453 = vld [vmem:[#allocation7 + $0x24] sm:$0xf]
    %v454 = vld [vmem:[#allocation7 + $0x28] sm:$0xf]
    %v455 = vld [vmem:[#allocation7 + $0x2c] sm:$0xf]
    %v456 = vld [vmem:[#allocation7 + $0x30] sm:$0xf]
    %v457 = vld [vmem:[#allocation7 + $0x34] sm:$0xf]
    %v458 = vld [vmem:[#allocation7 + $0x38] sm:$0xf]
    %v459 = vld [vmem:[#allocation7 + $0x3c] sm:$0xf]
    %v476 = vunpack.c.l.b16 %v444
    %v477 = vunpack.c.l.b16 %v445
    %v478 = vunpack.c.l.b16 %v446
    %v479 = vunpack.c.l.b16 %v447
    %v480 = vunpack.c.l.b16 %v448
    %v481 = vunpack.c.l.b16 %v449
    %v482 = vunpack.c.l.b16 %v450
    %v483 = vunpack.c.l.b16 %v451
    %v484 = vunpack.c.l.b16 %v452
    %v485 = vunpack.c.l.b16 %v453
    %v486 = vunpack.c.l.b16 %v454
    %v487 = vunpack.c.l.b16 %v455
    %v488 = vunpack.c.l.b16 %v456
    %v489 = vunpack.c.l.b16 %v457
    %v490 = vunpack.c.l.b16 %v458
    %v491 = vunpack.c.l.b16 %v459
    %v492 = vpack.c.b16 %v477, %v476
    %v493 = vpack.c.b16 %v479, %v478
    %v494 = vpack.c.b16 %v481, %v480
    %v495 = vpack.c.b16 %v483, %v482
    %v496 = vpack.c.b16 %v485, %v484
    %v497 = vpack.c.b16 %v487, %v486
    %v498 = vpack.c.b16 %v489, %v488
    %v499 = vpack.c.b16 %v491, %v490
    %508 = vmatprep.subr.bf16.mxu0 0
    %509 = vmatpush1.bf16.msra.mxu0 %v499
    %510 = vmatprep.subr.bf16.mxu0 0
    %511 = vmatpush1.bf16.msra.mxu0 %v498
    %512 = vmatprep.subr.bf16.mxu0 0
    %513 = vmatpush1.bf16.msra.mxu0 %v497
    %514 = vmatprep.subr.bf16.mxu0 0
    %515 = vmatpush1.bf16.msra.mxu0 %v496
    %516 = vmatprep.subr.bf16.mxu0 0
    %517 = vmatpush1.bf16.msra.mxu0 %v495
    %518 = vmatprep.subr.bf16.mxu0 0
    %519 = vmatpush1.bf16.msra.mxu0 %v494
    %520 = vmatprep.subr.bf16.mxu0 0
    %521 = vmatpush1.bf16.msra.mxu0 %v493
    %522 = vmatprep.subr.bf16.mxu0 0
    %523 = vmatpush1.bf16.msra.mxu0 %v492
    %524 = vmatprep.subr.bf16.mxu0 0
    %525 = vmatpush2.bf16.msra.mxu0 0
    %526 = vmatprep.subr.bf16.mxu0 0
    %527 = vmatpush2.bf16.msra.mxu0 0
    %528 = vmatprep.subr.bf16.mxu0 0
    %529 = vmatpush2.bf16.msra.mxu0 0
    %530 = vmatprep.subr.bf16.mxu0 0
    %531 = vmatpush2.bf16.msra.mxu0 0
    %532 = vmatprep.subr.bf16.mxu0 0
    %533 = vmatpush2.bf16.msra.mxu0 0
    %534 = vmatprep.subr.bf16.mxu0 0
    %535 = vmatpush2.bf16.msra.mxu0 0
    %536 = vmatprep.subr.bf16.mxu0 0
    %537 = vmatpush2.bf16.msra.mxu0 0
    %538 = vmatprep.subr.bf16.mxu0 0
    %539 = vmatpush2.bf16.msra.mxu0 0
    %540 = vmatprep.mubr.bf16.mxu0 0
    %541 = vmatmul.mubr.bf16.gmra.mxu0 %v436
    %v542 = vpop.f32.mrf.mxu0
    %v543 = vadd.f32 0.0, %v542
    %v544 = vpop.f32.mrf.mxu0
    %v545 = vpop.f32.mrf.mxu0
    %v546 = vadd.f32 0.0, %v545
    %v547 = vpop.f32.mrf.mxu0
    %548 = vmatprep.mubr.bf16.mxu0 0
    %549 = vmatmul.mubr.bf16.gmra.mxu0 %v437
    %v550 = vpop.f32.mrf.mxu0
    %v551 = vadd.f32 0.0, %v550
    %v552 = vpop.f32.mrf.mxu0
    %v553 = vpop.f32.mrf.mxu0
    %v554 = vadd.f32 0.0, %v553
    %v555 = vpop.f32.mrf.mxu0
    %556 = vmatprep.mubr.bf16.mxu0 0
    %557 = vmatmul.mubr.bf16.gmra.mxu0 %v438
    %v558 = vpop.f32.mrf.mxu0
    %v559 = vadd.f32 0.0, %v558
    %v560 = vpop.f32.mrf.mxu0
    %v561 = vpop.f32.mrf.mxu0
    %v562 = vadd.f32 0.0, %v561
    %v563 = vpop.f32.mrf.mxu0
    %564 = vmatprep.mubr.bf16.mxu0 0
    %565 = vmatmul.mubr.bf16.gmra.mxu0 %v439
    %v566 = vpop.f32.mrf.mxu0
    %v567 = vadd.f32 0.0, %v566
    %v568 = vpop.f32.mrf.mxu0
    %v569 = vpop.f32.mrf.mxu0
    %v570 = vadd.f32 0.0, %v569
    %v571 = vpop.f32.mrf.mxu0
    %572 = vmatprep.mubr.bf16.mxu0 0
    %573 = vmatmul.mubr.bf16.gmra.mxu0 %v440
    %v574 = vpop.f32.mrf.mxu0
    %v575 = vadd.f32 0.0, %v574
    %v576 = vpop.f32.mrf.mxu0
    %v577 = vpop.f32.mrf.mxu0
    %v578 = vadd.f32 0.0, %v577
    %v579 = vpop.f32.mrf.mxu0
    %580 = vmatprep.mubr.bf16.mxu0 0
    %581 = vmatmul.mubr.bf16.gmra.mxu0 %v441
    %v582 = vpop.f32.mrf.mxu0
    %v583 = vadd.f32 0.0, %v582
    %v584 = vpop.f32.mrf.mxu0
    %v585 = vpop.f32.mrf.mxu0
    %v586 = vadd.f32 0.0, %v585
    %v587 = vpop.f32.mrf.mxu0
    %588 = vmatprep.mubr.bf16.mxu0 0
    %589 = vmatmul.mubr.bf16.gmra.mxu0 %v442
    %v590 = vpop.f32.mrf.mxu0
    %v591 = vadd.f32 0.0, %v590
    %v592 = vpop.f32.mrf.mxu0
    %v593 = vpop.f32.mrf.mxu0
    %v594 = vadd.f32 0.0, %v593
    %v595 = vpop.f32.mrf.mxu0
    %596 = vmatprep.mubr.bf16.mxu0 0
    %597 = vmatmul.mubr.bf16.gmra.mxu0 %v443
    %v598 = vpop.f32.mrf.mxu0
    %v599 = vadd.f32 0.0, %v598
    %v600 = vpop.f32.mrf.mxu0
    %v601 = vpop.f32.mrf.mxu0
    %v602 = vadd.f32 0.0, %v601
    %v603 = vpop.f32.mrf.mxu0
    %604 = vdwg.mxu0
    %v621 = vunpack.c.l.b16 %v404
    %v622 = vunpack.c.l.b16 %v405
    %v623 = vunpack.c.l.b16 %v406
    %v624 = vunpack.c.l.b16 %v407
    %v625 = vunpack.c.l.b16 %v408
    %v626 = vunpack.c.l.b16 %v409
    %v627 = vunpack.c.l.b16 %v410
    %v628 = vunpack.c.l.b16 %v411
    %v629 = vunpack.c.l.b16 %v412
    %v630 = vunpack.c.l.b16 %v413
    %v631 = vunpack.c.l.b16 %v414
    %v632 = vunpack.c.l.b16 %v415
    %v633 = vunpack.c.l.b16 %v416
    %v634 = vunpack.c.l.b16 %v417
    %v635 = vunpack.c.l.b16 %v418
    %v636 = vunpack.c.l.b16 %v419
    %v637 = vpack.c.b16 %v622, %v621
    %v638 = vpack.c.b16 %v624, %v623
    %v639 = vpack.c.b16 %v626, %v625
    %v640 = vpack.c.b16 %v628, %v627
    %v641 = vpack.c.b16 %v630, %v629
    %v642 = vpack.c.b16 %v632, %v631
    %v643 = vpack.c.b16 %v634, %v633
    %v644 = vpack.c.b16 %v636, %v635
    %653 = vmatprep.subr.bf16.mxu0 0
    %654 = vmatpush1.bf16.msra.mxu0 %v644
    %655 = vmatprep.subr.bf16.mxu0 0
    %656 = vmatpush1.bf16.msra.mxu0 %v643
    %657 = vmatprep.subr.bf16.mxu0 0
    %658 = vmatpush1.bf16.msra.mxu0 %v642
    %659 = vmatprep.subr.bf16.mxu0 0
    %660 = vmatpush1.bf16.msra.mxu0 %v641
    %661 = vmatprep.subr.bf16.mxu0 0
    %662 = vmatpush1.bf16.msra.mxu0 %v640
    %663 = vmatprep.subr.bf16.mxu0 0
    %664 = vmatpush1.bf16.msra.mxu0 %v639
    %665 = vmatprep.subr.bf16.mxu0 0
    %666 = vmatpush1.bf16.msra.mxu0 %v638
    %667 = vmatprep.subr.bf16.mxu0 0
    %668 = vmatpush1.bf16.msra.mxu0 %v637
    %669 = vmatprep.subr.bf16.mxu0 0
    %670 = vmatpush2.bf16.msra.mxu0 0
    %671 = vmatprep.subr.bf16.mxu0 0
    %672 = vmatpush2.bf16.msra.mxu0 0
    %673 = vmatprep.subr.bf16.mxu0 0
    %674 = vmatpush2.bf16.msra.mxu0 0
    %675 = vmatprep.subr.bf16.mxu0 0
    %676 = vmatpush2.bf16.msra.mxu0 0
    %677 = vmatprep.subr.bf16.mxu0 0
    %678 = vmatpush2.bf16.msra.mxu0 0
    %679 = vmatprep.subr.bf16.mxu0 0
    %680 = vmatpush2.bf16.msra.mxu0 0
    %681 = vmatprep.subr.bf16.mxu0 0
    %682 = vmatpush2.bf16.msra.mxu0 0
    %683 = vmatprep.subr.bf16.mxu0 0
    %684 = vmatpush2.bf16.msra.mxu0 0
    %685 = vmatprep.mubr.bf16.mxu0 0
    %686 = vmatmul.mubr.bf16.gmra.mxu0 %v396
    %v687 = vpop.f32.mrf.mxu0
    %v688 = vadd.f32 %v543, %v687
    %v689 = vpop.f32.mrf.mxu0
    %v690 = vpop.f32.mrf.mxu0
    %v691 = vadd.f32 %v546, %v690
    %v692 = vpop.f32.mrf.mxu0
    %693 = vmatprep.mubr.bf16.mxu0 0
    %694 = vmatmul.mubr.bf16.gmra.mxu0 %v397
    %v695 = vpop.f32.mrf.mxu0
    %v696 = vadd.f32 %v551, %v695
    %v697 = vpop.f32.mrf.mxu0
    %v698 = vpop.f32.mrf.mxu0
    %v699 = vadd.f32 %v554, %v698
    %v700 = vpop.f32.mrf.mxu0
    %701 = vmatprep.mubr.bf16.mxu0 0
    %702 = vmatmul.mubr.bf16.gmra.mxu0 %v398
    %v703 = vpop.f32.mrf.mxu0
    %v704 = vadd.f32 %v559, %v703
    %v705 = vpop.f32.mrf.mxu0
    %v706 = vpop.f32.mrf.mxu0
    %v707 = vadd.f32 %v562, %v706
    %v708 = vpop.f32.mrf.mxu0
    %709 = vmatprep.mubr.bf16.mxu0 0
    %710 = vmatmul.mubr.bf16.gmra.mxu0 %v399
    %v711 = vpop.f32.mrf.mxu0
    %v712 = vadd.f32 %v567, %v711
    %v713 = vpop.f32.mrf.mxu0
    %v714 = vpop.f32.mrf.mxu0
    %v715 = vadd.f32 %v570, %v714
    %v716 = vpop.f32.mrf.mxu0
    %717 = vmatprep.mubr.bf16.mxu0 0
    %718 = vmatmul.mubr.bf16.gmra.mxu0 %v400
    %v719 = vpop.f32.mrf.mxu0
    %v720 = vadd.f32 %v575, %v719
    %v721 = vpop.f32.mrf.mxu0
    %v722 = vpop.f32.mrf.mxu0
    %v723 = vadd.f32 %v578, %v722
    %v724 = vpop.f32.mrf.mxu0
    %725 = vmatprep.mubr.bf16.mxu0 0
    %726 = vmatmul.mubr.bf16.gmra.mxu0 %v401
    %v727 = vpop.f32.mrf.mxu0
    %v728 = vadd.f32 %v583, %v727
    %v729 = vpop.f32.mrf.mxu0
    %v730 = vpop.f32.mrf.mxu0
    %v731 = vadd.f32 %v586, %v730
    %v732 = vpop.f32.mrf.mxu0
    %733 = vmatprep.mubr.bf16.mxu0 0
    %734 = vmatmul.mubr.bf16.gmra.mxu0 %v402
    %v735 = vpop.f32.mrf.mxu0
    %v736 = vadd.f32 %v591, %v735
    %v737 = vpop.f32.mrf.mxu0
    %v738 = vpop.f32.mrf.mxu0
    %v739 = vadd.f32 %v594, %v738
    %v740 = vpop.f32.mrf.mxu0
    %741 = vmatprep.mubr.bf16.mxu0 0
    %742 = vmatmul.mubr.bf16.gmra.mxu0 %v403
    %v743 = vpop.f32.mrf.mxu0
    %v744 = vadd.f32 %v599, %v743
    %v745 = vpop.f32.mrf.mxu0
    %v746 = vpop.f32.mrf.mxu0
    %v747 = vadd.f32 %v602, %v746
    %v748 = vpop.f32.mrf.mxu0
    %749 = vdwg.mxu0
    %v750 = vld [vmem:[%s3] sm:$0x1]
    %v752 = vlaneseq
    %v753 = vshrl.u32 %v752, 7
    %v754 = vsub.s32 0, %v753
    %v755 = vrot.slane %v750, %v754
    %v757 = vadd.f32 %v688, %v755
    %v758 = vadd.f32 %v691, %v755
    %v759 = vadd.f32 %v696, %v755
    %v760 = vadd.f32 %v699, %v755
    %v761 = vadd.f32 %v704, %v755
    %v762 = vadd.f32 %v707, %v755
    %v763 = vadd.f32 %v712, %v755
    %v764 = vadd.f32 %v715, %v755
    %v765 = vadd.f32 %v720, %v755
    %v766 = vadd.f32 %v723, %v755
    %v767 = vadd.f32 %v728, %v755
    %v768 = vadd.f32 %v731, %v755
    %v769 = vadd.f32 %v736, %v755
    %v770 = vadd.f32 %v739, %v755
    %v771 = vadd.f32 %v744, %v755
    %v772 = vadd.f32 %v747, %v755
    %773 = vst [vmem:[#allocation8] sm:$0xff] %v757
    %774 = vst [vmem:[#allocation8 + $0x8] sm:$0xff] %v758
    %775 = vst [vmem:[#allocation8 + $0x10] sm:$0xff] %v759
    %776 = vst [vmem:[#allocation8 + $0x18] sm:$0xff] %v760
    %777 = vst [vmem:[#allocation8 + $0x20] sm:$0xff] %v761
    %778 = vst [vmem:[#allocation8 + $0x28] sm:$0xff] %v762
    %779 = vst [vmem:[#allocation8 + $0x30] sm:$0xff] %v763
    %780 = vst [vmem:[#allocation8 + $0x38] sm:$0xff] %v764
    %781 = vst [vmem:[#allocation8 + $0x40] sm:$0xff] %v765
    %782 = vst [vmem:[#allocation8 + $0x48] sm:$0xff] %v766
    %783 = vst [vmem:[#allocation8 + $0x50] sm:$0xff] %v767
    %784 = vst [vmem:[#allocation8 + $0x58] sm:$0xff] %v768
    %785 = vst [vmem:[#allocation8 + $0x60] sm:$0xff] %v769
    %786 = vst [vmem:[#allocation8 + $0x68] sm:$0xff] %v770
    %787 = vst [vmem:[#allocation8 + $0x70] sm:$0xff] %v771
    %788 = vst [vmem:[#allocation8 + $0x78] sm:$0xff] %v772
    // Predicated region
    $region30: #{tpu_custom_call.1} parent=1 // pred_check
      _
    $region31: #{tpu_custom_call.1} parent=1 // pred_check_branch
      %790 = sbr.rel (0) target = $region33
    $region32: #{tpu_custom_call.1} parent=1 // pred_region
      %s792 = ssub.s32 2048, 2048
      %793 = vsyncadd [#allocation4], %s792
      %s794 = sshll.u32 [#allocation8], 4
      %s795 = int_to_ptr.vmem [resolvable:$true] %s794
      %800 = dma.vmem_to_hbm [thread:$0]  %s795, 2048, %s4, [#allocation4], 128, 128, 8
    $region33: #{tpu_custom_call.1} parent=1 // pred_fallthru
      _
    // Predicated region
    $region34: #{tpu_custom_call.1} parent=1 // pred_check
      _
    $region35: #{tpu_custom_call.1} parent=1 // pred_check_branch
      %802 = sbr.rel (0) target = $region37
    $region36: #{tpu_custom_call.1} parent=1 // pred_region
      %803 = dma.done [#allocation4], 2048
    $region37: #{tpu_custom_call.1} parent=1 // pred_fallthru
      _
    %804 = vsyncpa [#allocation3], 1
    %805 = vsyncpa [#allocation6], 1
    %806 = vsyncpa [#allocation4], 1

</llo_original>
